<compile_context>
chip_gen: v7x
topology: tpu7x:2x2x1
jax: 0.10.0
libtpu: 0.0.40
codegen_flags: <defaults>
</compile_context>

<pallas_src>
import functools

import jax
import jax.numpy as jnp
from jax.experimental import pallas as pl
from jax.experimental.pallas import tpu as pltpu


def _round_up(v, m):
    return -(-v // m) * m


def _pick_batch_block(n, per_image_bytes, target_bytes=2 << 20):
    """Images per grid step: big enough to amortize per-step overhead, but keep
    >= 2 grid steps when possible and divide N evenly (no ragged blocks)."""
    nb = max(1, min(n, target_bytes // max(1, per_image_bytes)))
    while nb > 1 and -(-n // nb) < 2:     # keep pipelining / megacore depth
        nb -= 1
    while n % nb:                          # exact divisor of N
        nb -= 1
    return nb


def _sa_kernel(x_ref, w_ref, o_ref, pm_ref, *, k, pad, H, W, Hp, Wp, C, Nb, TOP):
    # x_ref : (Nb, C, H, W) input block (native dtype)
    # w_ref : (2*k*k,) float32 conv weights in SMEM (PyTorch OIHW, flattened)
    # o_ref : (Nb, C, H, W)
    # pm_ref: (TOP + Nb*Hp + 8, 2*Wp) f32 scratch holding the zero-padded
    #         2-channel (avg | max) map; avg half at lanes [0,Wp), max at [Wp,2Wp).
    kk = k * k
    inv_c = 1.0 / C
    nbhp = Nb * Hp

    # ---- channel mean / max, written into the zero-padded conv-input map ----
    pm_ref[...] = jnp.zeros_like(pm_ref)
    for n in range(Nb):
        x0 = x_ref[n, 0]                               # (H, W) native dtype
        ch_sum = x0.astype(jnp.float32)                # f32 accumulator
        ch_max = x0                                    # exact in native dtype
        for c in range(1, C):
            xc = x_ref[n, c]
            ch_sum = ch_sum + xc.astype(jnp.float32)
            ch_max = jnp.maximum(ch_max, xc)
        r0 = TOP + n * Hp                              # sublane-aligned (TOP, Hp % 8 == 0)
        pm_ref[r0:r0 + H, 0:W] = ch_sum * inv_c
        pm_ref[r0:r0 + H, Wp:Wp + W] = ch_max.astype(jnp.float32)

    # ---- k x k "same" conv over the (avg, max) map: no masks anywhere ----
    # For tap (dy, dx): out[y, x] += w[dy,dx] * padded[y + dy - pad, x + dx - pad].
    # Row shift  : sublane-offset load of the scratch (start = TOP - pad + dy).
    # Col shift  : one lane roll of the lane-stacked 2-channel map per tap.
    # All out-of-image reads land in physically zeroed border lanes/rows.
    acc = jnp.zeros((nbhp, Wp), jnp.float32)
    for dy in range(k):
        row0 = TOP - pad + dy
        rpm = pm_ref[row0:row0 + nbhp, :]              # (Nb*Hp, 2*Wp) f32
        for dx in range(k):
            amt = (pad - dx) % (2 * Wp)                # jnp.roll-style shift
            s = pltpu.roll(rpm, amt, axis=1) if amt else rpm
            w_a = w_ref[dy * k + dx]                   # avg-channel tap (SMEM scalar)
            w_m = w_ref[kk + dy * k + dx]              # max-channel tap (SMEM scalar)
            acc = acc + s[:, :Wp] * w_a + s[:, Wp:] * w_m

    # ---- sigmoid + broadcast multiply (native dtype), per image ----
    for n in range(Nb):
        att = jax.nn.sigmoid(acc[n * Hp:n * Hp + H, 0:W])        # (H, W) f32
        xn = x_ref[n]                                            # (C, H, W)
        o_ref[n] = (xn * att[None].astype(xn.dtype)).astype(o_ref.dtype)


def sa_forward(x, conv_w, kernel_size=7):
    """x: (N, C, H, W); conv_w: (1, 2, k, k) (PyTorch OIHW, no bias)."""
    assert kernel_size in (3, 7), "kernel size must be 3 or 7"
    pad = kernel_size // 2
    N, C, H, W = x.shape
    assert conv_w.shape == (1, 2, kernel_size, kernel_size)

    # Padded-map geometry (full lane / sublane occupancy for the conv stage).
    Hp = _round_up(H + 2 * pad, 8)
    Wp = max(_round_up(W + 2 * pad, 128), 128)
    TOP = 8                                            # aligned top zero-pad (>= pad)

    itemsize = x.dtype.itemsize
    per_image_bytes = C * H * W * itemsize
    Nb = _pick_batch_block(N, per_image_bytes)
    R = TOP + Nb * Hp + 8                              # scratch rows (multiple of 8)

    w_flat = conv_w.astype(jnp.float32).reshape(-1)    # (2*k*k,) -> SMEM scalars

    kernel = functools.partial(
        _sa_kernel, k=kernel_size, pad=pad, H=H, W=W, Hp=Hp, Wp=Wp,
        C=C, Nb=Nb, TOP=TOP)

    # Generation-aware VMEM budget (v7x has only 64 MiB physical VMEM).
    try:
        vmem_cap = int(pltpu.get_tpu_info().vmem_capacity_bytes)
    except Exception:
        vmem_cap = 64 << 20
    block_bytes = Nb * per_image_bytes
    pm_bytes = R * 2 * Wp * 4
    need = 4 * block_bytes + pm_bytes + (4 << 20)      # dbl-buffered in+out + scratch + slack
    vmem_limit = int(min(max(need, 16 << 20), (vmem_cap * 3) // 4))

    cost = pl.CostEstimate(
        flops=int(N * H * W * (3 * C + 4 * kernel_size * kernel_size)),
        transcendentals=int(N * H * W),
        bytes_accessed=int(2 * N * C * H * W * itemsize + w_flat.size * 4),
    )

    out = pl.pallas_call(
        kernel,
        out_shape=jax.ShapeDtypeStruct((N, C, H, W), x.dtype),
        grid_spec=pltpu.PrefetchScalarGridSpec(
            num_scalar_prefetch=0,
            grid=(N // Nb,),
            in_specs=[
                pl.BlockSpec((Nb, C, H, W), lambda i: (i, 0, 0, 0)),
                pl.BlockSpec(memory_space=pltpu.MemorySpace.SMEM),
            ],
            out_specs=pl.BlockSpec((Nb, C, H, W), lambda i: (i, 0, 0, 0)),
            scratch_shapes=[pltpu.VMEM((R, 2 * Wp), jnp.float32)],
        ),
        compiler_params=pltpu.CompilerParams(
            dimension_semantics=("parallel",),
            vmem_limit_bytes=vmem_limit,
        ),
        cost_estimate=cost,
    )(x, w_flat)

    # TODO(synk): for N==1 inference with very large C*H*W slabs, add a spatial
    # row-tile grid axis with a pad-row halo so both v7x TensorCores get work and
    # each block (plus double-buffering) stays well under 64 MiB VMEM.
    return out


def sa_reference(x, conv_w, kernel_size=7):
    """Pure-JAX reference matching the PyTorch forward exactly."""
    pad = kernel_size // 2
    avg = jnp.mean(x, axis=1, keepdims=True)
    mx = jnp.max(x, axis=1, keepdims=True)
    x1 = jnp.concatenate([avg, mx], axis=1)
    y = jax.lax.conv_general_dilated(
        x1, conv_w, window_strides=(1, 1),
        padding=[(pad, pad), (pad, pad)],
        dimension_numbers=("NCHW", "OIHW", "NCHW"))
    return x * jax.nn.sigmoid(y)


if __name__ == "__main__":
    kernel_size = 7
    N, C, H, W = 2, 4, 16, 16

    key = jax.random.PRNGKey(0)
    kx, kw = jax.random.split(key)
    x = jax.random.normal(kx, (N, C, H, W), dtype=jnp.float32)

    # Deterministic synthetic conv weight (Conv2d(2, 1, k, bias=False) shape).
    fan_in = 2 * kernel_size * kernel_size
    bound = 1.0 / (fan_in ** 0.5)
    conv_w = jax.random.uniform(kw, (1, 2, kernel_size, kernel_size),
                                dtype=jnp.float32, minval=-bound, maxval=bound)

    out = jax.block_until_ready(sa_forward(x, conv_w, kernel_size))
    ref = sa_reference(x, conv_w, kernel_size)

    assert out.shape == (N, C, H, W)
    assert jnp.allclose(out, ref, atol=1e-5, rtol=1e-5), (
        float(jnp.max(jnp.abs(out - ref))))

    print("KERNEL_OK")
</pallas_src>

<mosaic_0001>
module attributes {stable_mosaic.version = 11 : i64} {
  func.func @_sa_kernel(%arg0: i32, %arg1: memref<1x4x16x16xf32, #tpu.memory_space<vmem>>, %arg2: memref<98xf32, #tpu.memory_space<smem>>, %arg3: memref<1x4x16x16xf32, #tpu.memory_space<vmem>>, %arg4: memref<40x256xf32, #tpu.memory_space<vmem>>) attributes {dimension_semantics = [#tpu.dimension_semantics<parallel>], iteration_bounds = array<i64: 2>, scalar_prefetch = 0 : i64, scratch_operands = 1 : i64, tpu.core_type = #tpu.core_type<tc>, window_params = [{transform_indices = @transform_0, window_bounds = array<i64: 1, 4, 16, 16>}, {transform_indices = @transform_1, window_bounds = array<i64: 98>}, {transform_indices = @transform_2, window_bounds = array<i64: 1, 4, 16, 16>}]} {
    %cst = arith.constant 0.000000e+00 : f32
    %0 = vector.broadcast %cst : f32 to vector<40x256xf32>
    %c0 = arith.constant 0 : index
    %c0_0 = arith.constant 0 : index
    %1 = vector.load %arg4[%c0, %c0_0] : memref<40x256xf32, #tpu.memory_space<vmem>>, vector<40x256xf32>
    tpu.vector_store %arg4[%c0, %c0_0], %0 {strides = array<i32>} : memref<40x256xf32, #tpu.memory_space<vmem>>, vector<40x256xf32>,
    %c0_1 = arith.constant 0 : index
    %c0_2 = arith.constant 0 : index
    %c0_3 = arith.constant 0 : index
    %c0_4 = arith.constant 0 : index
    %2 = vector.load %arg1[%c0_1, %c0_2, %c0_3, %c0_4] : memref<1x4x16x16xf32, #tpu.memory_space<vmem>>, vector<1x1x16x16xf32>
    %3 = vector.shape_cast %2 : vector<1x1x16x16xf32> to vector<16x16xf32>
    %c0_5 = arith.constant 0 : index
    %c1 = arith.constant 1 : index
    %c0_6 = arith.constant 0 : index
    %c0_7 = arith.constant 0 : index
    %4 = vector.load %arg1[%c0_5, %c1, %c0_6, %c0_7] : memref<1x4x16x16xf32, #tpu.memory_space<vmem>>, vector<1x1x16x16xf32>
    %5 = vector.shape_cast %4 : vector<1x1x16x16xf32> to vector<16x16xf32>
    %6 = arith.addf %3, %5 : vector<16x16xf32>
    %7 = arith.maximumf %3, %5 : vector<16x16xf32>
    %c0_8 = arith.constant 0 : index
    %c2 = arith.constant 2 : index
    %c0_9 = arith.constant 0 : index
    %c0_10 = arith.constant 0 : index
    %8 = vector.load %arg1[%c0_8, %c2, %c0_9, %c0_10] : memref<1x4x16x16xf32, #tpu.memory_space<vmem>>, vector<1x1x16x16xf32>
    %9 = vector.shape_cast %8 : vector<1x1x16x16xf32> to vector<16x16xf32>
    %10 = arith.addf %6, %9 : vector<16x16xf32>
    %11 = arith.maximumf %7, %9 : vector<16x16xf32>
    %c0_11 = arith.constant 0 : index
    %c3 = arith.constant 3 : index
    %c0_12 = arith.constant 0 : index
    %c0_13 = arith.constant 0 : index
    %12 = vector.load %arg1[%c0_11, %c3, %c0_12, %c0_13] : memref<1x4x16x16xf32, #tpu.memory_space<vmem>>, vector<1x1x16x16xf32>
    %13 = vector.shape_cast %12 : vector<1x1x16x16xf32> to vector<16x16xf32>
    %14 = arith.addf %10, %13 : vector<16x16xf32>
    %15 = arith.maximumf %11, %13 : vector<16x16xf32>
    %cst_14 = arith.constant 2.500000e-01 : f32
    %16 = vector.broadcast %cst_14 : f32 to vector<16x16xf32>
    %17 = arith.mulf %14, %16 : vector<16x16xf32>
    %c8 = arith.constant 8 : index
    %c0_15 = arith.constant 0 : index
    %18 = vector.load %arg4[%c8, %c0_15] : memref<40x256xf32, #tpu.memory_space<vmem>>, vector<16x16xf32>
    tpu.vector_store %arg4[%c8, %c0_15], %17 {strides = array<i32>} : memref<40x256xf32, #tpu.memory_space<vmem>>, vector<16x16xf32>,
    %c8_16 = arith.constant 8 : index
    %c128 = arith.constant 128 : index
    %19 = vector.load %arg4[%c8_16, %c128] : memref<40x256xf32, #tpu.memory_space<vmem>>, vector<16x16xf32>
    tpu.vector_store %arg4[%c8_16, %c128], %15 {strides = array<i32>} : memref<40x256xf32, #tpu.memory_space<vmem>>, vector<16x16xf32>,
    %cst_17 = arith.constant 0.000000e+00 : f32
    %20 = vector.broadcast %cst_17 : f32 to vector<24x128xf32>
    %c5 = arith.constant 5 : index
    %c0_18 = arith.constant 0 : index
    %21 = vector.load %arg4[%c5, %c0_18] : memref<40x256xf32, #tpu.memory_space<vmem>>, vector<24x256xf32>
    %c3_i32 = arith.constant 3 : i32
    %22 = tpu.dynamic_rotate %21 by %c3_i32 dim 1 : vector<24x256xf32>, i32 -> vector<24x256xf32>
    %c0_19 = arith.constant 0 : index
    %23 = memref.load %arg2[%c0_19] : memref<98xf32, #tpu.memory_space<smem>>
    %c49 = arith.constant 49 : index
    %24 = memref.load %arg2[%c49] : memref<98xf32, #tpu.memory_space<smem>>
    %25 = vector.extract_strided_slice %22 {offsets = [0, 0], sizes = [24, 128], strides = [1, 1]} : vector<24x256xf32> to vector<24x128xf32>
    %26 = vector.broadcast %23 : f32 to vector<24x128xf32>
    %27 = arith.mulf %25, %26 : vector<24x128xf32>
    %28 = arith.addf %20, %27 : vector<24x128xf32>
    %29 = vector.extract_strided_slice %22 {offsets = [0, 128], sizes = [24, 128], strides = [1, 1]} : vector<24x256xf32> to vector<24x128xf32>
    %30 = vector.broadcast %24 : f32 to vector<24x128xf32>
    %31 = arith.mulf %29, %30 : vector<24x128xf32>
    %32 = arith.addf %28, %31 : vector<24x128xf32>
    %c2_i32 = arith.constant 2 : i32
    %33 = tpu.dynamic_rotate %21 by %c2_i32 dim 1 : vector<24x256xf32>, i32 -> vector<24x256xf32>
    %c1_20 = arith.constant 1 : index
    %34 = memref.load %arg2[%c1_20] : memref<98xf32, #tpu.memory_space<smem>>
    %c50 = arith.constant 50 : index
    %35 = memref.load %arg2[%c50] : memref<98xf32, #tpu.memory_space<smem>>
    %36 = vector.extract_strided_slice %33 {offsets = [0, 0], sizes = [24, 128], strides = [1, 1]} : vector<24x256xf32> to vector<24x128xf32>
    %37 = vector.broadcast %34 : f32 to vector<24x128xf32>
    %38 = arith.mulf %36, %37 : vector<24x128xf32>
    %39 = arith.addf %32, %38 : vector<24x128xf32>
    %40 = vector.extract_strided_slice %33 {offsets = [0, 128], sizes = [24, 128], strides = [1, 1]} : vector<24x256xf32> to vector<24x128xf32>
    %41 = vector.broadcast %35 : f32 to vector<24x128xf32>
    %42 = arith.mulf %40, %41 : vector<24x128xf32>
    %43 = arith.addf %39, %42 : vector<24x128xf32>
    %c1_i32 = arith.constant 1 : i32
    %44 = tpu.dynamic_rotate %21 by %c1_i32 dim 1 : vector<24x256xf32>, i32 -> vector<24x256xf32>
    %c2_21 = arith.constant 2 : index
    %45 = memref.load %arg2[%c2_21] : memref<98xf32, #tpu.memory_space<smem>>
    %c51 = arith.constant 51 : index
    %46 = memref.load %arg2[%c51] : memref<98xf32, #tpu.memory_space<smem>>
    %47 = vector.extract_strided_slice %44 {offsets = [0, 0], sizes = [24, 128], strides = [1, 1]} : vector<24x256xf32> to vector<24x128xf32>
    %48 = vector.broadcast %45 : f32 to vector<24x128xf32>
    %49 = arith.mulf %47, %48 : vector<24x128xf32>
    %50 = arith.addf %43, %49 : vector<24x128xf32>
    %51 = vector.extract_strided_slice %44 {offsets = [0, 128], sizes = [24, 128], strides = [1, 1]} : vector<24x256xf32> to vector<24x128xf32>
    %52 = vector.broadcast %46 : f32 to vector<24x128xf32>
    %53 = arith.mulf %51, %52 : vector<24x128xf32>
    %54 = arith.addf %50, %53 : vector<24x128xf32>
    %c3_22 = arith.constant 3 : index
    %55 = memref.load %arg2[%c3_22] : memref<98xf32, #tpu.memory_space<smem>>
    %c52 = arith.constant 52 : index
    %56 = memref.load %arg2[%c52] : memref<98xf32, #tpu.memory_space<smem>>
    %57 = vector.extract_strided_slice %21 {offsets = [0, 0], sizes = [24, 128], strides = [1, 1]} : vector<24x256xf32> to vector<24x128xf32>
    %58 = vector.broadcast %55 : f32 to vector<24x128xf32>
    %59 = arith.mulf %57, %58 : vector<24x128xf32>
    %60 = arith.addf %54, %59 : vector<24x128xf32>
    %61 = vector.extract_strided_slice %21 {offsets = [0, 128], sizes = [24, 128], strides = [1, 1]} : vector<24x256xf32> to vector<24x128xf32>
    %62 = vector.broadcast %56 : f32 to vector<24x128xf32>
    %63 = arith.mulf %61, %62 : vector<24x128xf32>
    %64 = arith.addf %60, %63 : vector<24x128xf32>
    %c255_i32 = arith.constant 255 : i32
    %65 = tpu.dynamic_rotate %21 by %c255_i32 dim 1 : vector<24x256xf32>, i32 -> vector<24x256xf32>
    %c4 = arith.constant 4 : index
    %66 = memref.load %arg2[%c4] : memref<98xf32, #tpu.memory_space<smem>>
    %c53 = arith.constant 53 : index
    %67 = memref.load %arg2[%c53] : memref<98xf32, #tpu.memory_space<smem>>
    %68 = vector.extract_strided_slice %65 {offsets = [0, 0], sizes = [24, 128], strides = [1, 1]} : vector<24x256xf32> to vector<24x128xf32>
    %69 = vector.broadcast %66 : f32 to vector<24x128xf32>
    %70 = arith.mulf %68, %69 : vector<24x128xf32>
    %71 = arith.addf %64, %70 : vector<24x128xf32>
    %72 = vector.extract_strided_slice %65 {offsets = [0, 128], sizes = [24, 128], strides = [1, 1]} : vector<24x256xf32> to vector<24x128xf32>
    %73 = vector.broadcast %67 : f32 to vector<24x128xf32>
    %74 = arith.mulf %72, %73 : vector<24x128xf32>
    %75 = arith.addf %71, %74 : vector<24x128xf32>
    %c254_i32 = arith.constant 254 : i32
    %76 = tpu.dynamic_rotate %21 by %c254_i32 dim 1 : vector<24x256xf32>, i32 -> vector<24x256xf32>
    %c5_23 = arith.constant 5 : index
    %77 = memref.load %arg2[%c5_23] : memref<98xf32, #tpu.memory_space<smem>>
    %c54 = arith.constant 54 : index
    %78 = memref.load %arg2[%c54] : memref<98xf32, #tpu.memory_space<smem>>
    %79 = vector.extract_strided_slice %76 {offsets = [0, 0], sizes = [24, 128], strides = [1, 1]} : vector<24x256xf32> to vector<24x128xf32>
    %80 = vector.broadcast %77 : f32 to vector<24x128xf32>
    %81 = arith.mulf %79, %80 : vector<24x128xf32>
    %82 = arith.addf %75, %81 : vector<24x128xf32>
    %83 = vector.extract_strided_slice %76 {offsets = [0, 128], sizes = [24, 128], strides = [1, 1]} : vector<24x256xf32> to vector<24x128xf32>
    %84 = vector.broadcast %78 : f32 to vector<24x128xf32>
    %85 = arith.mulf %83, %84 : vector<24x128xf32>
    %86 = arith.addf %82, %85 : vector<24x128xf32>
    %c253_i32 = arith.constant 253 : i32
    %87 = tpu.dynamic_rotate %21 by %c253_i32 dim 1 : vector<24x256xf32>, i32 -> vector<24x256xf32>
    %c6 = arith.constant 6 : index
    %88 = memref.load %arg2[%c6] : memref<98xf32, #tpu.memory_space<smem>>
    %c55 = arith.constant 55 : index
    %89 = memref.load %arg2[%c55] : memref<98xf32, #tpu.memory_space<smem>>
    %90 = vector.extract_strided_slice %87 {offsets = [0, 0], sizes = [24, 128], strides = [1, 1]} : vector<24x256xf32> to vector<24x128xf32>
    %91 = vector.broadcast %88 : f32 to vector<24x128xf32>
    %92 = arith.mulf %90, %91 : vector<24x128xf32>
    %93 = arith.addf %86, %92 : vector<24x128xf32>
    %94 = vector.extract_strided_slice %87 {offsets = [0, 128], sizes = [24, 128], strides = [1, 1]} : vector<24x256xf32> to vector<24x128xf32>
    %95 = vector.broadcast %89 : f32 to vector<24x128xf32>
    %96 = arith.mulf %94, %95 : vector<24x128xf32>
    %97 = arith.addf %93, %96 : vector<24x128xf32>
    %c6_24 = arith.constant 6 : index
    %c0_25 = arith.constant 0 : index
    %98 = vector.load %arg4[%c6_24, %c0_25] : memref<40x256xf32, #tpu.memory_space<vmem>>, vector<24x256xf32>
    %c3_i32_26 = arith.constant 3 : i32
    %99 = tpu.dynamic_rotate %98 by %c3_i32_26 dim 1 : vector<24x256xf32>, i32 -> vector<24x256xf32>
    %c7 = arith.constant 7 : index
    %100 = memref.load %arg2[%c7] : memref<98xf32, #tpu.memory_space<smem>>
    %c56 = arith.constant 56 : index
    %101 = memref.load %arg2[%c56] : memref<98xf32, #tpu.memory_space<smem>>
    %102 = vector.extract_strided_slice %99 {offsets = [0, 0], sizes = [24, 128], strides = [1, 1]} : vector<24x256xf32> to vector<24x128xf32>
    %103 = vector.broadcast %100 : f32 to vector<24x128xf32>
    %104 = arith.mulf %102, %103 : vector<24x128xf32>
    %105 = arith.addf %97, %104 : vector<24x128xf32>
    %106 = vector.extract_strided_slice %99 {offsets = [0, 128], sizes = [24, 128], strides = [1, 1]} : vector<24x256xf32> to vector<24x128xf32>
    %107 = vector.broadcast %101 : f32 to vector<24x128xf32>
    %108 = arith.mulf %106, %107 : vector<24x128xf32>
    %109 = arith.addf %105, %108 : vector<24x128xf32>
    %c2_i32_27 = arith.constant 2 : i32
    %110 = tpu.dynamic_rotate %98 by %c2_i32_27 dim 1 : vector<24x256xf32>, i32 -> vector<24x256xf32>
    %c8_28 = arith.constant 8 : index
    %111 = memref.load %arg2[%c8_28] : memref<98xf32, #tpu.memory_space<smem>>
    %c57 = arith.constant 57 : index
    %112 = memref.load %arg2[%c57] : memref<98xf32, #tpu.memory_space<smem>>
    %113 = vector.extract_strided_slice %110 {offsets = [0, 0], sizes = [24, 128], strides = [1, 1]} : vector<24x256xf32> to vector<24x128xf32>
    %114 = vector.broadcast %111 : f32 to vector<24x128xf32>
    %115 = arith.mulf %113, %114 : vector<24x128xf32>
    %116 = arith.addf %109, %115 : vector<24x128xf32>
    %117 = vector.extract_strided_slice %110 {offsets = [0, 128], sizes = [24, 128], strides = [1, 1]} : vector<24x256xf32> to vector<24x128xf32>
    %118 = vector.broadcast %112 : f32 to vector<24x128xf32>
    %119 = arith.mulf %117, %118 : vector<24x128xf32>
    %120 = arith.addf %116, %119 : vector<24x128xf32>
    %c1_i32_29 = arith.constant 1 : i32
    %121 = tpu.dynamic_rotate %98 by %c1_i32_29 dim 1 : vector<24x256xf32>, i32 -> vector<24x256xf32>
    %c9 = arith.constant 9 : index
    %122 = memref.load %arg2[%c9] : memref<98xf32, #tpu.memory_space<smem>>
    %c58 = arith.constant 58 : index
    %123 = memref.load %arg2[%c58] : memref<98xf32, #tpu.memory_space<smem>>
    %124 = vector.extract_strided_slice %121 {offsets = [0, 0], sizes = [24, 128], strides = [1, 1]} : vector<24x256xf32> to vector<24x128xf32>
    %125 = vector.broadcast %122 : f32 to vector<24x128xf32>
    %126 = arith.mulf %124, %125 : vector<24x128xf32>
    %127 = arith.addf %120, %126 : vector<24x128xf32>
    %128 = vector.extract_strided_slice %121 {offsets = [0, 128], sizes = [24, 128], strides = [1, 1]} : vector<24x256xf32> to vector<24x128xf32>
    %129 = vector.broadcast %123 : f32 to vector<24x128xf32>
    %130 = arith.mulf %128, %129 : vector<24x128xf32>
    %131 = arith.addf %127, %130 : vector<24x128xf32>
    %c10 = arith.constant 10 : index
    %132 = memref.load %arg2[%c10] : memref<98xf32, #tpu.memory_space<smem>>
    %c59 = arith.constant 59 : index
    %133 = memref.load %arg2[%c59] : memref<98xf32, #tpu.memory_space<smem>>
    %134 = vector.extract_strided_slice %98 {offsets = [0, 0], sizes = [24, 128], strides = [1, 1]} : vector<24x256xf32> to vector<24x128xf32>
    %135 = vector.broadcast %132 : f32 to vector<24x128xf32>
    %136 = arith.mulf %134, %135 : vector<24x128xf32>
    %137 = arith.addf %131, %136 : vector<24x128xf32>
    %138 = vector.extract_strided_slice %98 {offsets = [0, 128], sizes = [24, 128], strides = [1, 1]} : vector<24x256xf32> to vector<24x128xf32>
    %139 = vector.broadcast %133 : f32 to vector<24x128xf32>
    %140 = arith.mulf %138, %139 : vector<24x128xf32>
    %141 = arith.addf %137, %140 : vector<24x128xf32>
    %c255_i32_30 = arith.constant 255 : i32
    %142 = tpu.dynamic_rotate %98 by %c255_i32_30 dim 1 : vector<24x256xf32>, i32 -> vector<24x256xf32>
    %c11 = arith.constant 11 : index
    %143 = memref.load %arg2[%c11] : memref<98xf32, #tpu.memory_space<smem>>
    %c60 = arith.constant 60 : index
    %144 = memref.load %arg2[%c60] : memref<98xf32, #tpu.memory_space<smem>>
    %145 = vector.extract_strided_slice %142 {offsets = [0, 0], sizes = [24, 128], strides = [1, 1]} : vector<24x256xf32> to vector<24x128xf32>
    %146 = vector.broadcast %143 : f32 to vector<24x128xf32>
    %147 = arith.mulf %145, %146 : vector<24x128xf32>
    %148 = arith.addf %141, %147 : vector<24x128xf32>
    %149 = vector.extract_strided_slice %142 {offsets = [0, 128], sizes = [24, 128], strides = [1, 1]} : vector<24x256xf32> to vector<24x128xf32>
    %150 = vector.broadcast %144 : f32 to vector<24x128xf32>
    %151 = arith.mulf %149, %150 : vector<24x128xf32>
    %152 = arith.addf %148, %151 : vector<24x128xf32>
    %c254_i32_31 = arith.constant 254 : i32
    %153 = tpu.dynamic_rotate %98 by %c254_i32_31 dim 1 : vector<24x256xf32>, i32 -> vector<24x256xf32>
    %c12 = arith.constant 12 : index
    %154 = memref.load %arg2[%c12] : memref<98xf32, #tpu.memory_space<smem>>
    %c61 = arith.constant 61 : index
    %155 = memref.load %arg2[%c61] : memref<98xf32, #tpu.memory_space<smem>>
    %156 = vector.extract_strided_slice %153 {offsets = [0, 0], sizes = [24, 128], strides = [1, 1]} : vector<24x256xf32> to vector<24x128xf32>
    %157 = vector.broadcast %154 : f32 to vector<24x128xf32>
    %158 = arith.mulf %156, %157 : vector<24x128xf32>
    %159 = arith.addf %152, %158 : vector<24x128xf32>
    %160 = vector.extract_strided_slice %153 {offsets = [0, 128], sizes = [24, 128], strides = [1, 1]} : vector<24x256xf32> to vector<24x128xf32>
    %161 = vector.broadcast %155 : f32 to vector<24x128xf32>
    %162 = arith.mulf %160, %161 : vector<24x128xf32>
    %163 = arith.addf %159, %162 : vector<24x128xf32>
    %c253_i32_32 = arith.constant 253 : i32
    %164 = tpu.dynamic_rotate %98 by %c253_i32_32 dim 1 : vector<24x256xf32>, i32 -> vector<24x256xf32>
    %c13 = arith.constant 13 : index
    %165 = memref.load %arg2[%c13] : memref<98xf32, #tpu.memory_space<smem>>
    %c62 = arith.constant 62 : index
    %166 = memref.load %arg2[%c62] : memref<98xf32, #tpu.memory_space<smem>>
    %167 = vector.extract_strided_slice %164 {offsets = [0, 0], sizes = [24, 128], strides = [1, 1]} : vector<24x256xf32> to vector<24x128xf32>
    %168 = vector.broadcast %165 : f32 to vector<24x128xf32>
    %169 = arith.mulf %167, %168 : vector<24x128xf32>
    %170 = arith.addf %163, %169 : vector<24x128xf32>
    %171 = vector.extract_strided_slice %164 {offsets = [0, 128], sizes = [24, 128], strides = [1, 1]} : vector<24x256xf32> to vector<24x128xf32>
    %172 = vector.broadcast %166 : f32 to vector<24x128xf32>
    %173 = arith.mulf %171, %172 : vector<24x128xf32>
    %174 = arith.addf %170, %173 : vector<24x128xf32>
    %c7_33 = arith.constant 7 : index
    %c0_34 = arith.constant 0 : index
    %175 = vector.load %arg4[%c7_33, %c0_34] : memref<40x256xf32, #tpu.memory_space<vmem>>, vector<24x256xf32>
    %c3_i32_35 = arith.constant 3 : i32
    %176 = tpu.dynamic_rotate %175 by %c3_i32_35 dim 1 : vector<24x256xf32>, i32 -> vector<24x256xf32>
    %c14 = arith.constant 14 : index
    %177 = memref.load %arg2[%c14] : memref<98xf32, #tpu.memory_space<smem>>
    %c63 = arith.constant 63 : index
    %178 = memref.load %arg2[%c63] : memref<98xf32, #tpu.memory_space<smem>>
    %179 = vector.extract_strided_slice %176 {offsets = [0, 0], sizes = [24, 128], strides = [1, 1]} : vector<24x256xf32> to vector<24x128xf32>
    %180 = vector.broadcast %177 : f32 to vector<24x128xf32>
    %181 = arith.mulf %179, %180 : vector<24x128xf32>
    %182 = arith.addf %174, %181 : vector<24x128xf32>
    %183 = vector.extract_strided_slice %176 {offsets = [0, 128], sizes = [24, 128], strides = [1, 1]} : vector<24x256xf32> to vector<24x128xf32>
    %184 = vector.broadcast %178 : f32 to vector<24x128xf32>
    %185 = arith.mulf %183, %184 : vector<24x128xf32>
    %186 = arith.addf %182, %185 : vector<24x128xf32>
    %c2_i32_36 = arith.constant 2 : i32
    %187 = tpu.dynamic_rotate %175 by %c2_i32_36 dim 1 : vector<24x256xf32>, i32 -> vector<24x256xf32>
    %c15 = arith.constant 15 : index
    %188 = memref.load %arg2[%c15] : memref<98xf32, #tpu.memory_space<smem>>
    %c64 = arith.constant 64 : index
    %189 = memref.load %arg2[%c64] : memref<98xf32, #tpu.memory_space<smem>>
    %190 = vector.extract_strided_slice %187 {offsets = [0, 0], sizes = [24, 128], strides = [1, 1]} : vector<24x256xf32> to vector<24x128xf32>
    %191 = vector.broadcast %188 : f32 to vector<24x128xf32>
    %192 = arith.mulf %190, %191 : vector<24x128xf32>
    %193 = arith.addf %186, %192 : vector<24x128xf32>
    %194 = vector.extract_strided_slice %187 {offsets = [0, 128], sizes = [24, 128], strides = [1, 1]} : vector<24x256xf32> to vector<24x128xf32>
    %195 = vector.broadcast %189 : f32 to vector<24x128xf32>
    %196 = arith.mulf %194, %195 : vector<24x128xf32>
    %197 = arith.addf %193, %196 : vector<24x128xf32>
    %c1_i32_37 = arith.constant 1 : i32
    %198 = tpu.dynamic_rotate %175 by %c1_i32_37 dim 1 : vector<24x256xf32>, i32 -> vector<24x256xf32>
    %c16 = arith.constant 16 : index
    %199 = memref.load %arg2[%c16] : memref<98xf32, #tpu.memory_space<smem>>
    %c65 = arith.constant 65 : index
    %200 = memref.load %arg2[%c65] : memref<98xf32, #tpu.memory_space<smem>>
    %201 = vector.extract_strided_slice %198 {offsets = [0, 0], sizes = [24, 128], strides = [1, 1]} : vector<24x256xf32> to vector<24x128xf32>
    %202 = vector.broadcast %199 : f32 to vector<24x128xf32>
    %203 = arith.mulf %201, %202 : vector<24x128xf32>
    %204 = arith.addf %197, %203 : vector<24x128xf32>
    %205 = vector.extract_strided_slice %198 {offsets = [0, 128], sizes = [24, 128], strides = [1, 1]} : vector<24x256xf32> to vector<24x128xf32>
    %206 = vector.broadcast %200 : f32 to vector<24x128xf32>
    %207 = arith.mulf %205, %206 : vector<24x128xf32>
    %208 = arith.addf %204, %207 : vector<24x128xf32>
    %c17 = arith.constant 17 : index
    %209 = memref.load %arg2[%c17] : memref<98xf32, #tpu.memory_space<smem>>
    %c66 = arith.constant 66 : index
    %210 = memref.load %arg2[%c66] : memref<98xf32, #tpu.memory_space<smem>>
    %211 = vector.extract_strided_slice %175 {offsets = [0, 0], sizes = [24, 128], strides = [1, 1]} : vector<24x256xf32> to vector<24x128xf32>
    %212 = vector.broadcast %209 : f32 to vector<24x128xf32>
    %213 = arith.mulf %211, %212 : vector<24x128xf32>
    %214 = arith.addf %208, %213 : vector<24x128xf32>
    %215 = vector.extract_strided_slice %175 {offsets = [0, 128], sizes = [24, 128], strides = [1, 1]} : vector<24x256xf32> to vector<24x128xf32>
    %216 = vector.broadcast %210 : f32 to vector<24x128xf32>
    %217 = arith.mulf %215, %216 : vector<24x128xf32>
    %218 = arith.addf %214, %217 : vector<24x128xf32>
    %c255_i32_38 = arith.constant 255 : i32
    %219 = tpu.dynamic_rotate %175 by %c255_i32_38 dim 1 : vector<24x256xf32>, i32 -> vector<24x256xf32>
    %c18 = arith.constant 18 : index
    %220 = memref.load %arg2[%c18] : memref<98xf32, #tpu.memory_space<smem>>
    %c67 = arith.constant 67 : index
    %221 = memref.load %arg2[%c67] : memref<98xf32, #tpu.memory_space<smem>>
    %222 = vector.extract_strided_slice %219 {offsets = [0, 0], sizes = [24, 128], strides = [1, 1]} : vector<24x256xf32> to vector<24x128xf32>
    %223 = vector.broadcast %220 : f32 to vector<24x128xf32>
    %224 = arith.mulf %222, %223 : vector<24x128xf32>
    %225 = arith.addf %218, %224 : vector<24x128xf32>
    %226 = vector.extract_strided_slice %219 {offsets = [0, 128], sizes = [24, 128], strides = [1, 1]} : vector<24x256xf32> to vector<24x128xf32>
    %227 = vector.broadcast %221 : f32 to vector<24x128xf32>
    %228 = arith.mulf %226, %227 : vector<24x128xf32>
    %229 = arith.addf %225, %228 : vector<24x128xf32>
    %c254_i32_39 = arith.constant 254 : i32
    %230 = tpu.dynamic_rotate %175 by %c254_i32_39 dim 1 : vector<24x256xf32>, i32 -> vector<24x256xf32>
    %c19 = arith.constant 19 : index
    %231 = memref.load %arg2[%c19] : memref<98xf32, #tpu.memory_space<smem>>
    %c68 = arith.constant 68 : index
    %232 = memref.load %arg2[%c68] : memref<98xf32, #tpu.memory_space<smem>>
    %233 = vector.extract_strided_slice %230 {offsets = [0, 0], sizes = [24, 128], strides = [1, 1]} : vector<24x256xf32> to vector<24x128xf32>
    %234 = vector.broadcast %231 : f32 to vector<24x128xf32>
    %235 = arith.mulf %233, %234 : vector<24x128xf32>
    %236 = arith.addf %229, %235 : vector<24x128xf32>
    %237 = vector.extract_strided_slice %230 {offsets = [0, 128], sizes = [24, 128], strides = [1, 1]} : vector<24x256xf32> to vector<24x128xf32>
    %238 = vector.broadcast %232 : f32 to vector<24x128xf32>
    %239 = arith.mulf %237, %238 : vector<24x128xf32>
    %240 = arith.addf %236, %239 : vector<24x128xf32>
    %c253_i32_40 = arith.constant 253 : i32
    %241 = tpu.dynamic_rotate %175 by %c253_i32_40 dim 1 : vector<24x256xf32>, i32 -> vector<24x256xf32>
    %c20 = arith.constant 20 : index
    %242 = memref.load %arg2[%c20] : memref<98xf32, #tpu.memory_space<smem>>
    %c69 = arith.constant 69 : index
    %243 = memref.load %arg2[%c69] : memref<98xf32, #tpu.memory_space<smem>>
    %244 = vector.extract_strided_slice %241 {offsets = [0, 0], sizes = [24, 128], strides = [1, 1]} : vector<24x256xf32> to vector<24x128xf32>
    %245 = vector.broadcast %242 : f32 to vector<24x128xf32>
    %246 = arith.mulf %244, %245 : vector<24x128xf32>
    %247 = arith.addf %240, %246 : vector<24x128xf32>
    %248 = vector.extract_strided_slice %241 {offsets = [0, 128], sizes = [24, 128], strides = [1, 1]} : vector<24x256xf32> to vector<24x128xf32>
    %249 = vector.broadcast %243 : f32 to vector<24x128xf32>
    %250 = arith.mulf %248, %249 : vector<24x128xf32>
    %251 = arith.addf %247, %250 : vector<24x128xf32>
    %c8_41 = arith.constant 8 : index
    %c0_42 = arith.constant 0 : index
    %252 = vector.load %arg4[%c8_41, %c0_42] : memref<40x256xf32, #tpu.memory_space<vmem>>, vector<24x256xf32>
    %c3_i32_43 = arith.constant 3 : i32
    %253 = tpu.dynamic_rotate %252 by %c3_i32_43 dim 1 : vector<24x256xf32>, i32 -> vector<24x256xf32>
    %c21 = arith.constant 21 : index
    %254 = memref.load %arg2[%c21] : memref<98xf32, #tpu.memory_space<smem>>
    %c70 = arith.constant 70 : index
    %255 = memref.load %arg2[%c70] : memref<98xf32, #tpu.memory_space<smem>>
    %256 = vector.extract_strided_slice %253 {offsets = [0, 0], sizes = [24, 128], strides = [1, 1]} : vector<24x256xf32> to vector<24x128xf32>
    %257 = vector.broadcast %254 : f32 to vector<24x128xf32>
    %258 = arith.mulf %256, %257 : vector<24x128xf32>
    %259 = arith.addf %251, %258 : vector<24x128xf32>
    %260 = vector.extract_strided_slice %253 {offsets = [0, 128], sizes = [24, 128], strides = [1, 1]} : vector<24x256xf32> to vector<24x128xf32>
    %261 = vector.broadcast %255 : f32 to vector<24x128xf32>
    %262 = arith.mulf %260, %261 : vector<24x128xf32>
    %263 = arith.addf %259, %262 : vector<24x128xf32>
    %c2_i32_44 = arith.constant 2 : i32
    %264 = tpu.dynamic_rotate %252 by %c2_i32_44 dim 1 : vector<24x256xf32>, i32 -> vector<24x256xf32>
    %c22 = arith.constant 22 : index
    %265 = memref.load %arg2[%c22] : memref<98xf32, #tpu.memory_space<smem>>
    %c71 = arith.constant 71 : index
    %266 = memref.load %arg2[%c71] : memref<98xf32, #tpu.memory_space<smem>>
    %267 = vector.extract_strided_slice %264 {offsets = [0, 0], sizes = [24, 128], strides = [1, 1]} : vector<24x256xf32> to vector<24x128xf32>
    %268 = vector.broadcast %265 : f32 to vector<24x128xf32>
    %269 = arith.mulf %267, %268 : vector<24x128xf32>
    %270 = arith.addf %263, %269 : vector<24x128xf32>
    %271 = vector.extract_strided_slice %264 {offsets = [0, 128], sizes = [24, 128], strides = [1, 1]} : vector<24x256xf32> to vector<24x128xf32>
    %272 = vector.broadcast %266 : f32 to vector<24x128xf32>
    %273 = arith.mulf %271, %272 : vector<24x128xf32>
    %274 = arith.addf %270, %273 : vector<24x128xf32>
    %c1_i32_45 = arith.constant 1 : i32
    %275 = tpu.dynamic_rotate %252 by %c1_i32_45 dim 1 : vector<24x256xf32>, i32 -> vector<24x256xf32>
    %c23 = arith.constant 23 : index
    %276 = memref.load %arg2[%c23] : memref<98xf32, #tpu.memory_space<smem>>
    %c72 = arith.constant 72 : index
    %277 = memref.load %arg2[%c72] : memref<98xf32, #tpu.memory_space<smem>>
    %278 = vector.extract_strided_slice %275 {offsets = [0, 0], sizes = [24, 128], strides = [1, 1]} : vector<24x256xf32> to vector<24x128xf32>
    %279 = vector.broadcast %276 : f32 to vector<24x128xf32>
    %280 = arith.mulf %278, %279 : vector<24x128xf32>
    %281 = arith.addf %274, %280 : vector<24x128xf32>
    %282 = vector.extract_strided_slice %275 {offsets = [0, 128], sizes = [24, 128], strides = [1, 1]} : vector<24x256xf32> to vector<24x128xf32>
    %283 = vector.broadcast %277 : f32 to vector<24x128xf32>
    %284 = arith.mulf %282, %283 : vector<24x128xf32>
    %285 = arith.addf %281, %284 : vector<24x128xf32>
    %c24 = arith.constant 24 : index
    %286 = memref.load %arg2[%c24] : memref<98xf32, #tpu.memory_space<smem>>
    %c73 = arith.constant 73 : index
    %287 = memref.load %arg2[%c73] : memref<98xf32, #tpu.memory_space<smem>>
    %288 = vector.extract_strided_slice %252 {offsets = [0, 0], sizes = [24, 128], strides = [1, 1]} : vector<24x256xf32> to vector<24x128xf32>
    %289 = vector.broadcast %286 : f32 to vector<24x128xf32>
    %290 = arith.mulf %288, %289 : vector<24x128xf32>
    %291 = arith.addf %285, %290 : vector<24x128xf32>
    %292 = vector.extract_strided_slice %252 {offsets = [0, 128], sizes = [24, 128], strides = [1, 1]} : vector<24x256xf32> to vector<24x128xf32>
    %293 = vector.broadcast %287 : f32 to vector<24x128xf32>
    %294 = arith.mulf %292, %293 : vector<24x128xf32>
    %295 = arith.addf %291, %294 : vector<24x128xf32>
    %c255_i32_46 = arith.constant 255 : i32
    %296 = tpu.dynamic_rotate %252 by %c255_i32_46 dim 1 : vector<24x256xf32>, i32 -> vector<24x256xf32>
    %c25 = arith.constant 25 : index
    %297 = memref.load %arg2[%c25] : memref<98xf32, #tpu.memory_space<smem>>
    %c74 = arith.constant 74 : index
    %298 = memref.load %arg2[%c74] : memref<98xf32, #tpu.memory_space<smem>>
    %299 = vector.extract_strided_slice %296 {offsets = [0, 0], sizes = [24, 128], strides = [1, 1]} : vector<24x256xf32> to vector<24x128xf32>
    %300 = vector.broadcast %297 : f32 to vector<24x128xf32>
    %301 = arith.mulf %299, %300 : vector<24x128xf32>
    %302 = arith.addf %295, %301 : vector<24x128xf32>
    %303 = vector.extract_strided_slice %296 {offsets = [0, 128], sizes = [24, 128], strides = [1, 1]} : vector<24x256xf32> to vector<24x128xf32>
    %304 = vector.broadcast %298 : f32 to vector<24x128xf32>
    %305 = arith.mulf %303, %304 : vector<24x128xf32>
    %306 = arith.addf %302, %305 : vector<24x128xf32>
    %c254_i32_47 = arith.constant 254 : i32
    %307 = tpu.dynamic_rotate %252 by %c254_i32_47 dim 1 : vector<24x256xf32>, i32 -> vector<24x256xf32>
    %c26 = arith.constant 26 : index
    %308 = memref.load %arg2[%c26] : memref<98xf32, #tpu.memory_space<smem>>
    %c75 = arith.constant 75 : index
    %309 = memref.load %arg2[%c75] : memref<98xf32, #tpu.memory_space<smem>>
    %310 = vector.extract_strided_slice %307 {offsets = [0, 0], sizes = [24, 128], strides = [1, 1]} : vector<24x256xf32> to vector<24x128xf32>
    %311 = vector.broadcast %308 : f32 to vector<24x128xf32>
    %312 = arith.mulf %310, %311 : vector<24x128xf32>
    %313 = arith.addf %306, %312 : vector<24x128xf32>
    %314 = vector.extract_strided_slice %307 {offsets = [0, 128], sizes = [24, 128], strides = [1, 1]} : vector<24x256xf32> to vector<24x128xf32>
    %315 = vector.broadcast %309 : f32 to vector<24x128xf32>
    %316 = arith.mulf %314, %315 : vector<24x128xf32>
    %317 = arith.addf %313, %316 : vector<24x128xf32>
    %c253_i32_48 = arith.constant 253 : i32
    %318 = tpu.dynamic_rotate %252 by %c253_i32_48 dim 1 : vector<24x256xf32>, i32 -> vector<24x256xf32>
    %c27 = arith.constant 27 : index
    %319 = memref.load %arg2[%c27] : memref<98xf32, #tpu.memory_space<smem>>
    %c76 = arith.constant 76 : index
    %320 = memref.load %arg2[%c76] : memref<98xf32, #tpu.memory_space<smem>>
    %321 = vector.extract_strided_slice %318 {offsets = [0, 0], sizes = [24, 128], strides = [1, 1]} : vector<24x256xf32> to vector<24x128xf32>
    %322 = vector.broadcast %319 : f32 to vector<24x128xf32>
    %323 = arith.mulf %321, %322 : vector<24x128xf32>
    %324 = arith.addf %317, %323 : vector<24x128xf32>
    %325 = vector.extract_strided_slice %318 {offsets = [0, 128], sizes = [24, 128], strides = [1, 1]} : vector<24x256xf32> to vector<24x128xf32>
    %326 = vector.broadcast %320 : f32 to vector<24x128xf32>
    %327 = arith.mulf %325, %326 : vector<24x128xf32>
    %328 = arith.addf %324, %327 : vector<24x128xf32>
    %c9_49 = arith.constant 9 : index
    %c0_50 = arith.constant 0 : index
    %329 = vector.load %arg4[%c9_49, %c0_50] : memref<40x256xf32, #tpu.memory_space<vmem>>, vector<24x256xf32>
    %c3_i32_51 = arith.constant 3 : i32
    %330 = tpu.dynamic_rotate %329 by %c3_i32_51 dim 1 : vector<24x256xf32>, i32 -> vector<24x256xf32>
    %c28 = arith.constant 28 : index
    %331 = memref.load %arg2[%c28] : memref<98xf32, #tpu.memory_space<smem>>
    %c77 = arith.constant 77 : index
    %332 = memref.load %arg2[%c77] : memref<98xf32, #tpu.memory_space<smem>>
    %333 = vector.extract_strided_slice %330 {offsets = [0, 0], sizes = [24, 128], strides = [1, 1]} : vector<24x256xf32> to vector<24x128xf32>
    %334 = vector.broadcast %331 : f32 to vector<24x128xf32>
    %335 = arith.mulf %333, %334 : vector<24x128xf32>
    %336 = arith.addf %328, %335 : vector<24x128xf32>
    %337 = vector.extract_strided_slice %330 {offsets = [0, 128], sizes = [24, 128], strides = [1, 1]} : vector<24x256xf32> to vector<24x128xf32>
    %338 = vector.broadcast %332 : f32 to vector<24x128xf32>
    %339 = arith.mulf %337, %338 : vector<24x128xf32>
    %340 = arith.addf %336, %339 : vector<24x128xf32>
    %c2_i32_52 = arith.constant 2 : i32
    %341 = tpu.dynamic_rotate %329 by %c2_i32_52 dim 1 : vector<24x256xf32>, i32 -> vector<24x256xf32>
    %c29 = arith.constant 29 : index
    %342 = memref.load %arg2[%c29] : memref<98xf32, #tpu.memory_space<smem>>
    %c78 = arith.constant 78 : index
    %343 = memref.load %arg2[%c78] : memref<98xf32, #tpu.memory_space<smem>>
    %344 = vector.extract_strided_slice %341 {offsets = [0, 0], sizes = [24, 128], strides = [1, 1]} : vector<24x256xf32> to vector<24x128xf32>
    %345 = vector.broadcast %342 : f32 to vector<24x128xf32>
    %346 = arith.mulf %344, %345 : vector<24x128xf32>
    %347 = arith.addf %340, %346 : vector<24x128xf32>
    %348 = vector.extract_strided_slice %341 {offsets = [0, 128], sizes = [24, 128], strides = [1, 1]} : vector<24x256xf32> to vector<24x128xf32>
    %349 = vector.broadcast %343 : f32 to vector<24x128xf32>
    %350 = arith.mulf %348, %349 : vector<24x128xf32>
    %351 = arith.addf %347, %350 : vector<24x128xf32>
    %c1_i32_53 = arith.constant 1 : i32
    %352 = tpu.dynamic_rotate %329 by %c1_i32_53 dim 1 : vector<24x256xf32>, i32 -> vector<24x256xf32>
    %c30 = arith.constant 30 : index
    %353 = memref.load %arg2[%c30] : memref<98xf32, #tpu.memory_space<smem>>
    %c79 = arith.constant 79 : index
    %354 = memref.load %arg2[%c79] : memref<98xf32, #tpu.memory_space<smem>>
    %355 = vector.extract_strided_slice %352 {offsets = [0, 0], sizes = [24, 128], strides = [1, 1]} : vector<24x256xf32> to vector<24x128xf32>
    %356 = vector.broadcast %353 : f32 to vector<24x128xf32>
    %357 = arith.mulf %355, %356 : vector<24x128xf32>
    %358 = arith.addf %351, %357 : vector<24x128xf32>
    %359 = vector.extract_strided_slice %352 {offsets = [0, 128], sizes = [24, 128], strides = [1, 1]} : vector<24x256xf32> to vector<24x128xf32>
    %360 = vector.broadcast %354 : f32 to vector<24x128xf32>
    %361 = arith.mulf %359, %360 : vector<24x128xf32>
    %362 = arith.addf %358, %361 : vector<24x128xf32>
    %c31 = arith.constant 31 : index
    %363 = memref.load %arg2[%c31] : memref<98xf32, #tpu.memory_space<smem>>
    %c80 = arith.constant 80 : index
    %364 = memref.load %arg2[%c80] : memref<98xf32, #tpu.memory_space<smem>>
    %365 = vector.extract_strided_slice %329 {offsets = [0, 0], sizes = [24, 128], strides = [1, 1]} : vector<24x256xf32> to vector<24x128xf32>
    %366 = vector.broadcast %363 : f32 to vector<24x128xf32>
    %367 = arith.mulf %365, %366 : vector<24x128xf32>
    %368 = arith.addf %362, %367 : vector<24x128xf32>
    %369 = vector.extract_strided_slice %329 {offsets = [0, 128], sizes = [24, 128], strides = [1, 1]} : vector<24x256xf32> to vector<24x128xf32>
    %370 = vector.broadcast %364 : f32 to vector<24x128xf32>
    %371 = arith.mulf %369, %370 : vector<24x128xf32>
    %372 = arith.addf %368, %371 : vector<24x128xf32>
    %c255_i32_54 = arith.constant 255 : i32
    %373 = tpu.dynamic_rotate %329 by %c255_i32_54 dim 1 : vector<24x256xf32>, i32 -> vector<24x256xf32>
    %c32 = arith.constant 32 : index
    %374 = memref.load %arg2[%c32] : memref<98xf32, #tpu.memory_space<smem>>
    %c81 = arith.constant 81 : index
    %375 = memref.load %arg2[%c81] : memref<98xf32, #tpu.memory_space<smem>>
    %376 = vector.extract_strided_slice %373 {offsets = [0, 0], sizes = [24, 128], strides = [1, 1]} : vector<24x256xf32> to vector<24x128xf32>
    %377 = vector.broadcast %374 : f32 to vector<24x128xf32>
    %378 = arith.mulf %376, %377 : vector<24x128xf32>
    %379 = arith.addf %372, %378 : vector<24x128xf32>
    %380 = vector.extract_strided_slice %373 {offsets = [0, 128], sizes = [24, 128], strides = [1, 1]} : vector<24x256xf32> to vector<24x128xf32>
    %381 = vector.broadcast %375 : f32 to vector<24x128xf32>
    %382 = arith.mulf %380, %381 : vector<24x128xf32>
    %383 = arith.addf %379, %382 : vector<24x128xf32>
    %c254_i32_55 = arith.constant 254 : i32
    %384 = tpu.dynamic_rotate %329 by %c254_i32_55 dim 1 : vector<24x256xf32>, i32 -> vector<24x256xf32>
    %c33 = arith.constant 33 : index
    %385 = memref.load %arg2[%c33] : memref<98xf32, #tpu.memory_space<smem>>
    %c82 = arith.constant 82 : index
    %386 = memref.load %arg2[%c82] : memref<98xf32, #tpu.memory_space<smem>>
    %387 = vector.extract_strided_slice %384 {offsets = [0, 0], sizes = [24, 128], strides = [1, 1]} : vector<24x256xf32> to vector<24x128xf32>
    %388 = vector.broadcast %385 : f32 to vector<24x128xf32>
    %389 = arith.mulf %387, %388 : vector<24x128xf32>
    %390 = arith.addf %383, %389 : vector<24x128xf32>
    %391 = vector.extract_strided_slice %384 {offsets = [0, 128], sizes = [24, 128], strides = [1, 1]} : vector<24x256xf32> to vector<24x128xf32>
    %392 = vector.broadcast %386 : f32 to vector<24x128xf32>
    %393 = arith.mulf %391, %392 : vector<24x128xf32>
    %394 = arith.addf %390, %393 : vector<24x128xf32>
    %c253_i32_56 = arith.constant 253 : i32
    %395 = tpu.dynamic_rotate %329 by %c253_i32_56 dim 1 : vector<24x256xf32>, i32 -> vector<24x256xf32>
    %c34 = arith.constant 34 : index
    %396 = memref.load %arg2[%c34] : memref<98xf32, #tpu.memory_space<smem>>
    %c83 = arith.constant 83 : index
    %397 = memref.load %arg2[%c83] : memref<98xf32, #tpu.memory_space<smem>>
    %398 = vector.extract_strided_slice %395 {offsets = [0, 0], sizes = [24, 128], strides = [1, 1]} : vector<24x256xf32> to vector<24x128xf32>
    %399 = vector.broadcast %396 : f32 to vector<24x128xf32>
    %400 = arith.mulf %398, %399 : vector<24x128xf32>
    %401 = arith.addf %394, %400 : vector<24x128xf32>
    %402 = vector.extract_strided_slice %395 {offsets = [0, 128], sizes = [24, 128], strides = [1, 1]} : vector<24x256xf32> to vector<24x128xf32>
    %403 = vector.broadcast %397 : f32 to vector<24x128xf32>
    %404 = arith.mulf %402, %403 : vector<24x128xf32>
    %405 = arith.addf %401, %404 : vector<24x128xf32>
    %c10_57 = arith.constant 10 : index
    %c0_58 = arith.constant 0 : index
    %406 = vector.load %arg4[%c10_57, %c0_58] : memref<40x256xf32, #tpu.memory_space<vmem>>, vector<24x256xf32>
    %c3_i32_59 = arith.constant 3 : i32
    %407 = tpu.dynamic_rotate %406 by %c3_i32_59 dim 1 : vector<24x256xf32>, i32 -> vector<24x256xf32>
    %c35 = arith.constant 35 : index
    %408 = memref.load %arg2[%c35] : memref<98xf32, #tpu.memory_space<smem>>
    %c84 = arith.constant 84 : index
    %409 = memref.load %arg2[%c84] : memref<98xf32, #tpu.memory_space<smem>>
    %410 = vector.extract_strided_slice %407 {offsets = [0, 0], sizes = [24, 128], strides = [1, 1]} : vector<24x256xf32> to vector<24x128xf32>
    %411 = vector.broadcast %408 : f32 to vector<24x128xf32>
    %412 = arith.mulf %410, %411 : vector<24x128xf32>
    %413 = arith.addf %405, %412 : vector<24x128xf32>
    %414 = vector.extract_strided_slice %407 {offsets = [0, 128], sizes = [24, 128], strides = [1, 1]} : vector<24x256xf32> to vector<24x128xf32>
    %415 = vector.broadcast %409 : f32 to vector<24x128xf32>
    %416 = arith.mulf %414, %415 : vector<24x128xf32>
    %417 = arith.addf %413, %416 : vector<24x128xf32>
    %c2_i32_60 = arith.constant 2 : i32
    %418 = tpu.dynamic_rotate %406 by %c2_i32_60 dim 1 : vector<24x256xf32>, i32 -> vector<24x256xf32>
    %c36 = arith.constant 36 : index
    %419 = memref.load %arg2[%c36] : memref<98xf32, #tpu.memory_space<smem>>
    %c85 = arith.constant 85 : index
    %420 = memref.load %arg2[%c85] : memref<98xf32, #tpu.memory_space<smem>>
    %421 = vector.extract_strided_slice %418 {offsets = [0, 0], sizes = [24, 128], strides = [1, 1]} : vector<24x256xf32> to vector<24x128xf32>
    %422 = vector.broadcast %419 : f32 to vector<24x128xf32>
    %423 = arith.mulf %421, %422 : vector<24x128xf32>
    %424 = arith.addf %417, %423 : vector<24x128xf32>
    %425 = vector.extract_strided_slice %418 {offsets = [0, 128], sizes = [24, 128], strides = [1, 1]} : vector<24x256xf32> to vector<24x128xf32>
    %426 = vector.broadcast %420 : f32 to vector<24x128xf32>
    %427 = arith.mulf %425, %426 : vector<24x128xf32>
    %428 = arith.addf %424, %427 : vector<24x128xf32>
    %c1_i32_61 = arith.constant 1 : i32
    %429 = tpu.dynamic_rotate %406 by %c1_i32_61 dim 1 : vector<24x256xf32>, i32 -> vector<24x256xf32>
    %c37 = arith.constant 37 : index
    %430 = memref.load %arg2[%c37] : memref<98xf32, #tpu.memory_space<smem>>
    %c86 = arith.constant 86 : index
    %431 = memref.load %arg2[%c86] : memref<98xf32, #tpu.memory_space<smem>>
    %432 = vector.extract_strided_slice %429 {offsets = [0, 0], sizes = [24, 128], strides = [1, 1]} : vector<24x256xf32> to vector<24x128xf32>
    %433 = vector.broadcast %430 : f32 to vector<24x128xf32>
    %434 = arith.mulf %432, %433 : vector<24x128xf32>
    %435 = arith.addf %428, %434 : vector<24x128xf32>
    %436 = vector.extract_strided_slice %429 {offsets = [0, 128], sizes = [24, 128], strides = [1, 1]} : vector<24x256xf32> to vector<24x128xf32>
    %437 = vector.broadcast %431 : f32 to vector<24x128xf32>
    %438 = arith.mulf %436, %437 : vector<24x128xf32>
    %439 = arith.addf %435, %438 : vector<24x128xf32>
    %c38 = arith.constant 38 : index
    %440 = memref.load %arg2[%c38] : memref<98xf32, #tpu.memory_space<smem>>
    %c87 = arith.constant 87 : index
    %441 = memref.load %arg2[%c87] : memref<98xf32, #tpu.memory_space<smem>>
    %442 = vector.extract_strided_slice %406 {offsets = [0, 0], sizes = [24, 128], strides = [1, 1]} : vector<24x256xf32> to vector<24x128xf32>
    %443 = vector.broadcast %440 : f32 to vector<24x128xf32>
    %444 = arith.mulf %442, %443 : vector<24x128xf32>
    %445 = arith.addf %439, %444 : vector<24x128xf32>
    %446 = vector.extract_strided_slice %406 {offsets = [0, 128], sizes = [24, 128], strides = [1, 1]} : vector<24x256xf32> to vector<24x128xf32>
    %447 = vector.broadcast %441 : f32 to vector<24x128xf32>
    %448 = arith.mulf %446, %447 : vector<24x128xf32>
    %449 = arith.addf %445, %448 : vector<24x128xf32>
    %c255_i32_62 = arith.constant 255 : i32
    %450 = tpu.dynamic_rotate %406 by %c255_i32_62 dim 1 : vector<24x256xf32>, i32 -> vector<24x256xf32>
    %c39 = arith.constant 39 : index
    %451 = memref.load %arg2[%c39] : memref<98xf32, #tpu.memory_space<smem>>
    %c88 = arith.constant 88 : index
    %452 = memref.load %arg2[%c88] : memref<98xf32, #tpu.memory_space<smem>>
    %453 = vector.extract_strided_slice %450 {offsets = [0, 0], sizes = [24, 128], strides = [1, 1]} : vector<24x256xf32> to vector<24x128xf32>
    %454 = vector.broadcast %451 : f32 to vector<24x128xf32>
    %455 = arith.mulf %453, %454 : vector<24x128xf32>
    %456 = arith.addf %449, %455 : vector<24x128xf32>
    %457 = vector.extract_strided_slice %450 {offsets = [0, 128], sizes = [24, 128], strides = [1, 1]} : vector<24x256xf32> to vector<24x128xf32>
    %458 = vector.broadcast %452 : f32 to vector<24x128xf32>
    %459 = arith.mulf %457, %458 : vector<24x128xf32>
    %460 = arith.addf %456, %459 : vector<24x128xf32>
    %c254_i32_63 = arith.constant 254 : i32
    %461 = tpu.dynamic_rotate %406 by %c254_i32_63 dim 1 : vector<24x256xf32>, i32 -> vector<24x256xf32>
    %c40 = arith.constant 40 : index
    %462 = memref.load %arg2[%c40] : memref<98xf32, #tpu.memory_space<smem>>
    %c89 = arith.constant 89 : index
    %463 = memref.load %arg2[%c89] : memref<98xf32, #tpu.memory_space<smem>>
    %464 = vector.extract_strided_slice %461 {offsets = [0, 0], sizes = [24, 128], strides = [1, 1]} : vector<24x256xf32> to vector<24x128xf32>
    %465 = vector.broadcast %462 : f32 to vector<24x128xf32>
    %466 = arith.mulf %464, %465 : vector<24x128xf32>
    %467 = arith.addf %460, %466 : vector<24x128xf32>
    %468 = vector.extract_strided_slice %461 {offsets = [0, 128], sizes = [24, 128], strides = [1, 1]} : vector<24x256xf32> to vector<24x128xf32>
    %469 = vector.broadcast %463 : f32 to vector<24x128xf32>
    %470 = arith.mulf %468, %469 : vector<24x128xf32>
    %471 = arith.addf %467, %470 : vector<24x128xf32>
    %c253_i32_64 = arith.constant 253 : i32
    %472 = tpu.dynamic_rotate %406 by %c253_i32_64 dim 1 : vector<24x256xf32>, i32 -> vector<24x256xf32>
    %c41 = arith.constant 41 : index
    %473 = memref.load %arg2[%c41] : memref<98xf32, #tpu.memory_space<smem>>
    %c90 = arith.constant 90 : index
    %474 = memref.load %arg2[%c90] : memref<98xf32, #tpu.memory_space<smem>>
    %475 = vector.extract_strided_slice %472 {offsets = [0, 0], sizes = [24, 128], strides = [1, 1]} : vector<24x256xf32> to vector<24x128xf32>
    %476 = vector.broadcast %473 : f32 to vector<24x128xf32>
    %477 = arith.mulf %475, %476 : vector<24x128xf32>
    %478 = arith.addf %471, %477 : vector<24x128xf32>
    %479 = vector.extract_strided_slice %472 {offsets = [0, 128], sizes = [24, 128], strides = [1, 1]} : vector<24x256xf32> to vector<24x128xf32>
    %480 = vector.broadcast %474 : f32 to vector<24x128xf32>
    %481 = arith.mulf %479, %480 : vector<24x128xf32>
    %482 = arith.addf %478, %481 : vector<24x128xf32>
    %c11_65 = arith.constant 11 : index
    %c0_66 = arith.constant 0 : index
    %483 = vector.load %arg4[%c11_65, %c0_66] : memref<40x256xf32, #tpu.memory_space<vmem>>, vector<24x256xf32>
    %c3_i32_67 = arith.constant 3 : i32
    %484 = tpu.dynamic_rotate %483 by %c3_i32_67 dim 1 : vector<24x256xf32>, i32 -> vector<24x256xf32>
    %c42 = arith.constant 42 : index
    %485 = memref.load %arg2[%c42] : memref<98xf32, #tpu.memory_space<smem>>
    %c91 = arith.constant 91 : index
    %486 = memref.load %arg2[%c91] : memref<98xf32, #tpu.memory_space<smem>>
    %487 = vector.extract_strided_slice %484 {offsets = [0, 0], sizes = [24, 128], strides = [1, 1]} : vector<24x256xf32> to vector<24x128xf32>
    %488 = vector.broadcast %485 : f32 to vector<24x128xf32>
    %489 = arith.mulf %487, %488 : vector<24x128xf32>
    %490 = arith.addf %482, %489 : vector<24x128xf32>
    %491 = vector.extract_strided_slice %484 {offsets = [0, 128], sizes = [24, 128], strides = [1, 1]} : vector<24x256xf32> to vector<24x128xf32>
    %492 = vector.broadcast %486 : f32 to vector<24x128xf32>
    %493 = arith.mulf %491, %492 : vector<24x128xf32>
    %494 = arith.addf %490, %493 : vector<24x128xf32>
    %c2_i32_68 = arith.constant 2 : i32
    %495 = tpu.dynamic_rotate %483 by %c2_i32_68 dim 1 : vector<24x256xf32>, i32 -> vector<24x256xf32>
    %c43 = arith.constant 43 : index
    %496 = memref.load %arg2[%c43] : memref<98xf32, #tpu.memory_space<smem>>
    %c92 = arith.constant 92 : index
    %497 = memref.load %arg2[%c92] : memref<98xf32, #tpu.memory_space<smem>>
    %498 = vector.extract_strided_slice %495 {offsets = [0, 0], sizes = [24, 128], strides = [1, 1]} : vector<24x256xf32> to vector<24x128xf32>
    %499 = vector.broadcast %496 : f32 to vector<24x128xf32>
    %500 = arith.mulf %498, %499 : vector<24x128xf32>
    %501 = arith.addf %494, %500 : vector<24x128xf32>
    %502 = vector.extract_strided_slice %495 {offsets = [0, 128], sizes = [24, 128], strides = [1, 1]} : vector<24x256xf32> to vector<24x128xf32>
    %503 = vector.broadcast %497 : f32 to vector<24x128xf32>
    %504 = arith.mulf %502, %503 : vector<24x128xf32>
    %505 = arith.addf %501, %504 : vector<24x128xf32>
    %c1_i32_69 = arith.constant 1 : i32
    %506 = tpu.dynamic_rotate %483 by %c1_i32_69 dim 1 : vector<24x256xf32>, i32 -> vector<24x256xf32>
    %c44 = arith.constant 44 : index
    %507 = memref.load %arg2[%c44] : memref<98xf32, #tpu.memory_space<smem>>
    %c93 = arith.constant 93 : index
    %508 = memref.load %arg2[%c93] : memref<98xf32, #tpu.memory_space<smem>>
    %509 = vector.extract_strided_slice %506 {offsets = [0, 0], sizes = [24, 128], strides = [1, 1]} : vector<24x256xf32> to vector<24x128xf32>
    %510 = vector.broadcast %507 : f32 to vector<24x128xf32>
    %511 = arith.mulf %509, %510 : vector<24x128xf32>
    %512 = arith.addf %505, %511 : vector<24x128xf32>
    %513 = vector.extract_strided_slice %506 {offsets = [0, 128], sizes = [24, 128], strides = [1, 1]} : vector<24x256xf32> to vector<24x128xf32>
    %514 = vector.broadcast %508 : f32 to vector<24x128xf32>
    %515 = arith.mulf %513, %514 : vector<24x128xf32>
    %516 = arith.addf %512, %515 : vector<24x128xf32>
    %c45 = arith.constant 45 : index
    %517 = memref.load %arg2[%c45] : memref<98xf32, #tpu.memory_space<smem>>
    %c94 = arith.constant 94 : index
    %518 = memref.load %arg2[%c94] : memref<98xf32, #tpu.memory_space<smem>>
    %519 = vector.extract_strided_slice %483 {offsets = [0, 0], sizes = [24, 128], strides = [1, 1]} : vector<24x256xf32> to vector<24x128xf32>
    %520 = vector.broadcast %517 : f32 to vector<24x128xf32>
    %521 = arith.mulf %519, %520 : vector<24x128xf32>
    %522 = arith.addf %516, %521 : vector<24x128xf32>
    %523 = vector.extract_strided_slice %483 {offsets = [0, 128], sizes = [24, 128], strides = [1, 1]} : vector<24x256xf32> to vector<24x128xf32>
    %524 = vector.broadcast %518 : f32 to vector<24x128xf32>
    %525 = arith.mulf %523, %524 : vector<24x128xf32>
    %526 = arith.addf %522, %525 : vector<24x128xf32>
    %c255_i32_70 = arith.constant 255 : i32
    %527 = tpu.dynamic_rotate %483 by %c255_i32_70 dim 1 : vector<24x256xf32>, i32 -> vector<24x256xf32>
    %c46 = arith.constant 46 : index
    %528 = memref.load %arg2[%c46] : memref<98xf32, #tpu.memory_space<smem>>
    %c95 = arith.constant 95 : index
    %529 = memref.load %arg2[%c95] : memref<98xf32, #tpu.memory_space<smem>>
    %530 = vector.extract_strided_slice %527 {offsets = [0, 0], sizes = [24, 128], strides = [1, 1]} : vector<24x256xf32> to vector<24x128xf32>
    %531 = vector.broadcast %528 : f32 to vector<24x128xf32>
    %532 = arith.mulf %530, %531 : vector<24x128xf32>
    %533 = arith.addf %526, %532 : vector<24x128xf32>
    %534 = vector.extract_strided_slice %527 {offsets = [0, 128], sizes = [24, 128], strides = [1, 1]} : vector<24x256xf32> to vector<24x128xf32>
    %535 = vector.broadcast %529 : f32 to vector<24x128xf32>
    %536 = arith.mulf %534, %535 : vector<24x128xf32>
    %537 = arith.addf %533, %536 : vector<24x128xf32>
    %c254_i32_71 = arith.constant 254 : i32
    %538 = tpu.dynamic_rotate %483 by %c254_i32_71 dim 1 : vector<24x256xf32>, i32 -> vector<24x256xf32>
    %c47 = arith.constant 47 : index
    %539 = memref.load %arg2[%c47] : memref<98xf32, #tpu.memory_space<smem>>
    %c96 = arith.constant 96 : index
    %540 = memref.load %arg2[%c96] : memref<98xf32, #tpu.memory_space<smem>>
    %541 = vector.extract_strided_slice %538 {offsets = [0, 0], sizes = [24, 128], strides = [1, 1]} : vector<24x256xf32> to vector<24x128xf32>
    %542 = vector.broadcast %539 : f32 to vector<24x128xf32>
    %543 = arith.mulf %541, %542 : vector<24x128xf32>
    %544 = arith.addf %537, %543 : vector<24x128xf32>
    %545 = vector.extract_strided_slice %538 {offsets = [0, 128], sizes = [24, 128], strides = [1, 1]} : vector<24x256xf32> to vector<24x128xf32>
    %546 = vector.broadcast %540 : f32 to vector<24x128xf32>
    %547 = arith.mulf %545, %546 : vector<24x128xf32>
    %548 = arith.addf %544, %547 : vector<24x128xf32>
    %c253_i32_72 = arith.constant 253 : i32
    %549 = tpu.dynamic_rotate %483 by %c253_i32_72 dim 1 : vector<24x256xf32>, i32 -> vector<24x256xf32>
    %c48 = arith.constant 48 : index
    %550 = memref.load %arg2[%c48] : memref<98xf32, #tpu.memory_space<smem>>
    %c97 = arith.constant 97 : index
    %551 = memref.load %arg2[%c97] : memref<98xf32, #tpu.memory_space<smem>>
    %552 = vector.extract_strided_slice %549 {offsets = [0, 0], sizes = [24, 128], strides = [1, 1]} : vector<24x256xf32> to vector<24x128xf32>
    %553 = vector.broadcast %550 : f32 to vector<24x128xf32>
    %554 = arith.mulf %552, %553 : vector<24x128xf32>
    %555 = arith.addf %548, %554 : vector<24x128xf32>
    %556 = vector.extract_strided_slice %549 {offsets = [0, 128], sizes = [24, 128], strides = [1, 1]} : vector<24x256xf32> to vector<24x128xf32>
    %557 = vector.broadcast %551 : f32 to vector<24x128xf32>
    %558 = arith.mulf %556, %557 : vector<24x128xf32>
    %559 = arith.addf %555, %558 : vector<24x128xf32>
    %560 = vector.extract_strided_slice %559 {offsets = [0, 0], sizes = [16, 16], strides = [1, 1]} : vector<24x128xf32> to vector<16x16xf32>
    %561 = arith.negf %560 : vector<16x16xf32>
    %562 = math.exp %561 : vector<16x16xf32>
    %cst_73 = arith.constant 1.000000e+00 : f32
    %563 = vector.broadcast %cst_73 : f32 to vector<16x16xf32>
    %564 = arith.addf %563, %562 : vector<16x16xf32>
    %565 = arith.divf %563, %564 : vector<16x16xf32>
    %c0_74 = arith.constant 0 : index
    %c0_75 = arith.constant 0 : index
    %c0_76 = arith.constant 0 : index
    %c0_77 = arith.constant 0 : index
    %566 = vector.load %arg1[%c0_74, %c0_75, %c0_76, %c0_77] : memref<1x4x16x16xf32, #tpu.memory_space<vmem>>, vector<1x4x16x16xf32>
    %567 = vector.shape_cast %566 : vector<1x4x16x16xf32> to vector<4x16x16xf32>
    %568 = vector.shape_cast %565 : vector<16x16xf32> to vector<1x16x16xf32>
    %569 = vector.broadcast %568 : vector<1x16x16xf32> to vector<4x16x16xf32>
    %570 = arith.mulf %567, %569 : vector<4x16x16xf32>
    %c0_78 = arith.constant 0 : index
    %c0_79 = arith.constant 0 : index
    %c0_80 = arith.constant 0 : index
    %c0_81 = arith.constant 0 : index
    %571 = vector.load %arg3[%c0_78, %c0_79, %c0_80, %c0_81] : memref<1x4x16x16xf32, #tpu.memory_space<vmem>>, vector<1x4x16x16xf32>
    %572 = vector.shape_cast %571 : vector<1x4x16x16xf32> to vector<4x16x16xf32>
    %573 = vector.shape_cast %570 : vector<4x16x16xf32> to vector<1x4x16x16xf32>
    tpu.vector_store %arg3[%c0_78, %c0_79, %c0_80, %c0_81], %573 {strides = array<i32>} : memref<1x4x16x16xf32, #tpu.memory_space<vmem>>, vector<1x4x16x16xf32>,
    return
  }
  func.func @transform_0(%arg0: i32) -> (i32, i32, i32, i32) {
    %c0_i32 = arith.constant 0 : i32
    %c0_i32_0 = arith.constant 0 : i32
    %c0_i32_1 = arith.constant 0 : i32
    %c0_i32_2 = arith.constant 0 : i32
    return %arg0, %c0_i32, %c0_i32_0, %c0_i32_1 : i32, i32, i32, i32
  }
  func.func @transform_1(%arg0: i32) -> i32 {
    %c0_i32 = arith.constant 0 : i32
    %c0_i32_0 = arith.constant 0 : i32
    return %c0_i32 : i32
  }
  func.func @transform_2(%arg0: i32) -> (i32, i32, i32, i32) {
    %c0_i32 = arith.constant 0 : i32
    %c0_i32_0 = arith.constant 0 : i32
    %c0_i32_1 = arith.constant 0 : i32
    %c0_i32_2 = arith.constant 0 : i32
    return %arg0, %c0_i32, %c0_i32_0, %c0_i32_1 : i32, i32, i32, i32
  }
}

</mosaic_0001>

<llo_original>
// kernel: tpu_custom_call.1
$region0: #{tpu_custom_call.1}
  #allocation0 [shape = 'u32[]', space=smem, size = 0x4, offset = 0x4, fixed_abs, tag = 'smem constant byte address 0x4 - core index']
  #allocation1 [shape = 'u32[144,128]{1,0:T(1,128)}', space=vmem, size = 0x12000, scoped, tag = 'internal scratch']
  #allocation2 [shape = 'f32[40,256]{1,0:T(8,128)}', space=vmem, size = 0xa000, scoped, tag = 'scratch operand']
  %s0 = inlined_call_operand.hbm [shape: f32[2,4,16,16], index: 0, kind: input, shape index: {}]
  %s1 = inlined_call_operand.vmem [shape: f32[98], index: 1, kind: input, shape index: {}]
  %s2 = inlined_call_operand.hbm [shape: f32[2,4,16,16], index: 2, kind: output, shape index: {}]
  %s3 = sld [smem:[#allocation0]]
  $region49: #{tpu_custom_call.1} parent=0
    _
  %s5 = ssub.s32 1, %s3
  %s6 = scalar_select 0, %s5, %s3
  $region1: #{tpu_custom_call.1} parent=0
    #allocation3 [shape = 'u8[65536]{0}', space=vmem, size = 0x10000, scoped, tag = 'input window, operand 0']
    #allocation4 [shape = 's32[2]{0}', space=sflag, size = 0x8, scoped, tag = 'scoped memory for tpu_custom_call.1']
    #allocation5 [shape = 's32[2]{0}', space=sflag, size = 0x8, scoped, tag = 'scoped memory for tpu_custom_call.1']
    #allocation6 [shape = 's32[2]{0}', space=sflag, size = 0x8, scoped, tag = 'scoped memory for tpu_custom_call.1']
    #allocation7 [shape = 'u8[512]{0}', space=smem, size = 0x200, scoped, tag = 'input window, operand 1, single buffered']
    #allocation8 [shape = 'u8[65536]{0}', space=vmem, size = 0x10000, scoped, tag = 'output window, operand 0']
    %7 = vsyncpa [#allocation4], 0
    %s8 = scalar_lea.sflag [#allocation4], 1
    %9 = vsyncpa %s8, 0
    %10 = vsyncpa [#allocation6], 0
    %11 = vsyncpa [#allocation5], 0
    %s12 = scalar_lea.sflag [#allocation5], 1
    %13 = vsyncpa %s12, 0
    loop: start=0, step=1, limit=4
    $region2: #{tpu_custom_call.1} parent=1 // loop_pre_header
      _
    $region3: #{tpu_custom_call.1} parent=1 // loop_header
      %s15 = sphi 0, %s19
      %p16 = scmp.ge.s32.totalorder %s15, 4
      %s25 = sphi 0, %s27
      %s28 = sphi 0, %s25
      %s29 = sphi 0, %s28
      %s45 = sphi 0, %s29
      %s49 = sphi 0, %s49
      %s51 = sphi 0, %s49
      %s52 = sphi 0, %s51
      %s66 = sphi 0, %s52
      %s72 = sphi 0, %s74
      %s75 = sphi 0, %s72
      %s76 = sphi 0, %s75
      %s92 = sphi 0, %s76
    $region4: #{tpu_custom_call.1} parent=1 // loop_header_branch
      %18 = sbr.rel (%p16) target = $region8
    $region5: #{tpu_custom_call.1} parent=1 // loop_body
      %s20 = ssub.s32 %s15, 1
      %s21 = ssub.s32 %s15, 2
      %s22 = sadd.s32 %s15, 1
      %s23 = ssub.s32 %s15, %s22
      %p24 = scmp.eq.s32.totalorder %s23, 0
      %s26 = sadd.s32 %s25, 1
      %s27 = scalar_select %p24, %s25, %s26
      %p30 = pneg %p24
      %p31 = scmp.eq.s32.totalorder %s15, 1
      %p32 = por %p30, %p31
      %p33 = scmp.ne.s32.totalorder %s25, %s28
      %p34 = scmp.eq.s32.totalorder %s15, 0
      %p35 = por %p33, %p34
      %p36 = scmp.ne.s32.totalorder %s25, %s28
      %p37 = scmp.eq.s32.totalorder %s20, 1
      %p38 = por %p36, %p37
      %p39 = scmp.ne.s32.totalorder %s28, %s29
      %p40 = scmp.eq.s32.totalorder %s20, 0
      %p41 = por %p39, %p40
      %p42 = scmp.ne.s32.totalorder %s28, %s29
      %p43 = scmp.eq.s32.totalorder %s21, 1
      %p44 = por %p42, %p43
      %p46 = scmp.ne.s32.totalorder %s29, %s45
      %p47 = scmp.eq.s32.totalorder %s21, 0
      %p48 = por %p46, %p47
      %s50 = sadd.s32 %s49, 1
      %p53 = scmp.eq.s32.totalorder %s15, 1
      %p54 = scmp.ne.s32.totalorder %s49, %s51
      %p55 = scmp.eq.s32.totalorder %s15, 0
      %p56 = por %p54, %p55
      %p57 = scmp.ne.s32.totalorder %s49, %s51
      %p58 = scmp.eq.s32.totalorder %s20, 1
      %p59 = por %p57, %p58
      %p60 = scmp.ne.s32.totalorder %s51, %s52
      %p61 = scmp.eq.s32.totalorder %s20, 0
      %p62 = por %p60, %p61
      %p63 = scmp.ne.s32.totalorder %s51, %s52
      %p64 = scmp.eq.s32.totalorder %s21, 1
      %p65 = por %p63, %p64
      %p67 = scmp.ne.s32.totalorder %s52, %s66
      %p68 = scmp.eq.s32.totalorder %s21, 0
      %p69 = por %p67, %p68
      %s70 = ssub.s32 %s15, %s22
      %p71 = scmp.eq.s32.totalorder %s70, 0
      %s73 = sadd.s32 %s72, 1
      %s74 = scalar_select %p71, %s72, %s73
      %p77 = pneg %p71
      %p78 = scmp.eq.s32.totalorder %s15, 1
      %p79 = por %p77, %p78
      %p80 = scmp.ne.s32.totalorder %s72, %s75
      %p81 = scmp.eq.s32.totalorder %s15, 0
      %p82 = por %p80, %p81
      %p83 = scmp.ne.s32.totalorder %s72, %s75
      %p84 = scmp.eq.s32.totalorder %s20, 1
      %p85 = por %p83, %p84
      %p86 = scmp.ne.s32.totalorder %s75, %s76
      %p87 = scmp.eq.s32.totalorder %s20, 0
      %p88 = por %p86, %p87
      %p89 = scmp.ne.s32.totalorder %s75, %s76
      %p90 = scmp.eq.s32.totalorder %s21, 1
      %p91 = por %p89, %p90
      %p93 = scmp.ne.s32.totalorder %s76, %s92
      %p94 = scmp.eq.s32.totalorder %s21, 0
      %p95 = por %p93, %p94
      %p96 = scmp.le.s32.totalorder 1, %s15
      %p97 = scmp.lt.s32.totalorder %s15, 3
      %p98 = pnand %p96, %p97
      %p99 = pneg %p98
      // Predicated region
      $region9: #{tpu_custom_call.1} parent=5 // pred_check
        _
      $region10: #{tpu_custom_call.1} parent=5 // pred_check_branch
        %101 = sbr.rel (%p98) target = $region12
      $region11: #{tpu_custom_call.1} parent=5 // pred_region
        %s102 = ssub.s32 %s15, 1
        // Predicated region
        $region13: #{tpu_custom_call.1} parent=11 // pred_check
          %p103 = pneg %p62
        $region14: #{tpu_custom_call.1} parent=11 // pred_check_branch
          %105 = sbr.rel (%p103) target = $region16
        $region15: #{tpu_custom_call.1} parent=11 // pred_region
          %s107 = ssub.s32 16, 16
          %108 = vsyncadd [#allocation6], %s107
          %s110 = sshll.u32 %s1, 4
          %s111 = int_to_ptr.vmem [resolvable:$true] %s110
          %113 = dma.vmem_to_smem %s111, 16, [#allocation7], [#allocation6]
        $region16: #{tpu_custom_call.1} parent=11 // pred_fallthru
          _
      $region12: #{tpu_custom_call.1} parent=5 // pred_fallthru
        _
      %p114 = scmp.lt.s32.totalorder %s15, 2
      // Predicated region
      $region17: #{tpu_custom_call.1} parent=5 // pred_check
        %p115 = pneg %p114
      $region18: #{tpu_custom_call.1} parent=5 // pred_check_branch
        %117 = sbr.rel (%p115) target = $region20
      $region19: #{tpu_custom_call.1} parent=5 // pred_region
        // Predicated region
        $region21: #{tpu_custom_call.1} parent=19 // pred_check
          %p118 = pneg %p35
        $region22: #{tpu_custom_call.1} parent=19 // pred_check_branch
          %120 = sbr.rel (%p118) target = $region24
        $region23: #{tpu_custom_call.1} parent=19 // pred_region
          %s121 = sand.u32 %s25, 1
          %s122 = scalar_lea.sflag [#allocation4], %s121
          %s123 = sand.u32 %s25, 1
          %s124 = smul.addr %s123, 64
          %s125 = scalar_lea.vmem [#allocation3], %s124
          %s127 = ssub.s32 1024, 1024
          %128 = vsyncadd %s122, %s127
          %s129 = smul.addr %s15, 8
          %s130 = smul.addr %s129, 128
          %s131 = scalar_lea.hbm %s0, %s130
          %s132 = sshll.u32 %s125, 4
          %s133 = int_to_ptr.vmem [resolvable:$true] %s132
          %138 = dma.hbm_to_vmem [thread:$0]  %s131, 1024, %s133, %s122, 128, 128, 8
        $region24: #{tpu_custom_call.1} parent=19 // pred_fallthru
          _
      $region20: #{tpu_custom_call.1} parent=5 // pred_fallthru
        _
      %p139 = scmp.le.s32.totalorder 1, %s15
      %p140 = scmp.lt.s32.totalorder %s15, 3
      %p141 = pnand %p139, %p140
      %p142 = pneg %p141
      // Predicated region
      $region25: #{tpu_custom_call.1} parent=5 // pred_check
        _
      $region26: #{tpu_custom_call.1} parent=5 // pred_check_branch
        %144 = sbr.rel (%p141) target = $region28
      $region27: #{tpu_custom_call.1} parent=5 // pred_region
        %s145 = ssub.s32 %s15, 1
        %s146 = sand.u32 %s28, 1
        %s147 = scalar_lea.sflag [#allocation4], %s146
        %s148 = sand.u32 %s28, 1
        %s149 = smul.addr %s148, 64
        %s150 = scalar_lea.vmem [#allocation3], %s149
        // Predicated region
        $region29: #{tpu_custom_call.1} parent=27 // pred_check
          %p151 = pneg %p41
        $region30: #{tpu_custom_call.1} parent=27 // pred_check_branch
          %153 = sbr.rel (%p151) target = $region32
        $region31: #{tpu_custom_call.1} parent=27 // pred_region
          %154 = dma.done %s147, 1024
        $region32: #{tpu_custom_call.1} parent=27 // pred_fallthru
          _
        // Predicated region
        $region33: #{tpu_custom_call.1} parent=27 // pred_check
          %p155 = pneg %p62
        $region34: #{tpu_custom_call.1} parent=27 // pred_check_branch
          %157 = sbr.rel (%p155) target = $region36
        $region35: #{tpu_custom_call.1} parent=27 // pred_region
          %158 = dma.done [#allocation6], 16
        $region36: #{tpu_custom_call.1} parent=27 // pred_fallthru
          _
        %159 = sfence
        %s160 = sand.u32 %s28, 1
        %s161 = scalar_lea.sflag [#allocation4], %s160
        %s162 = sand.u32 %s28, 1
        %s163 = smul.addr %s162, 64
        %s164 = scalar_lea.vmem [#allocation3], %s163
        %p165 = pneg %p41
        %p166 = pneg %p38
        %p167 = pneg %p62
        %p168 = pneg %p59
        %p169 = pneg %p88
        %p170 = pneg %p85
        %s171 = sand.u32 %s75, 1
        %s172 = scalar_lea.sflag [#allocation5], %s171
        %s173 = sand.u32 %s75, 1
        %s174 = smul.addr %s173, 64
        %s175 = scalar_lea.vmem [#allocation8], %s174
        %176 = vst [vmem:[#allocation2] sm:$0xff] 0.0
        %177 = vst [vmem:[#allocation2 + $0x8] sm:$0xff] 0.0
        %178 = vst [vmem:[#allocation2 + $0x10] sm:$0xff] 0.0
        %179 = vst [vmem:[#allocation2 + $0x18] sm:$0xff] 0.0
        %180 = vst [vmem:[#allocation2 + $0x20] sm:$0xff] 0.0
        %181 = vst [vmem:[#allocation2 + $0x28] sm:$0xff] 0.0
        %182 = vst [vmem:[#allocation2 + $0x30] sm:$0xff] 0.0
        %183 = vst [vmem:[#allocation2 + $0x38] sm:$0xff] 0.0
        %184 = vst [vmem:[#allocation2 + $0x40] sm:$0xff] 0.0
        %185 = vst [vmem:[#allocation2 + $0x48] sm:$0xff] 0.0
        %v186 = vld [vmem:[%s150] sm:$0xff]
        %v187 = vld [vmem:[%s150 + $0x8] sm:$0xff]
        %s188 = scalar_lea.vmem %s150, 16 [#allocation3]
        %v189 = vld [vmem:[%s188] sm:$0xff]
        %v190 = vld [vmem:[%s188 + $0x8] sm:$0xff]
        %v191 = vadd.f32 %v186, %v189
        %v192 = vadd.f32 %v187, %v190
        %v193 = vmax.f32 %v186, %v189
        %v194 = vmax.f32 %v187, %v190
        %s195 = scalar_lea.vmem %s150, 32 [#allocation3]
        %v196 = vld [vmem:[%s195] sm:$0xff]
        %v197 = vld [vmem:[%s195 + $0x8] sm:$0xff]
        %v198 = vadd.f32 %v191, %v196
        %v199 = vadd.f32 %v192, %v197
        %v200 = vmax.f32 %v193, %v196
        %v201 = vmax.f32 %v194, %v197
        %s202 = scalar_lea.vmem %s150, 48 [#allocation3]
        %v203 = vld [vmem:[%s202] sm:$0xff]
        %v204 = vld [vmem:[%s202 + $0x8] sm:$0xff]
        %v205 = vadd.f32 %v198, %v203
        %v206 = vadd.f32 %v199, %v204
        %v207 = vmax.f32 %v200, %v203
        %v208 = vmax.f32 %v201, %v204
        %v209 = vmul.f32 %v205, 0.25
        %v210 = vmul.f32 %v206, 0.25
        %vm211 = vcmask 130048
        %212 = vst.msk [vmem:[#allocation2 + $0x10] sm:$0xff] %vm211, %v209
        %213 = vst.msk [vmem:[#allocation2 + $0x20] sm:$0xff] %vm211, %v210
        %214 = vst.msk [vmem:[#allocation2 + $0x18] sm:$0xff] %vm211, %v207
        %215 = vst.msk [vmem:[#allocation2 + $0x28] sm:$0xff] %vm211, %v208
        %v216 = vld [vmem:[#allocation2] sm:$0xe0]
        %v217 = vld [vmem:[#allocation2 + $0x8] sm:$0xe0]
        %v218 = vld [vmem:[#allocation2 + $0x10] sm:$0xff]
        %v219 = vld [vmem:[#allocation2 + $0x18] sm:$0xff]
        %v220 = vld [vmem:[#allocation2 + $0x20] sm:$0xff]
        %v221 = vld [vmem:[#allocation2 + $0x28] sm:$0xff]
        %vm228 = vcmask 1042432
        %v229 = vrot.slane %v216, 5
        %v230 = vrot.slane %v218, 5
        %v231 = vsel %vm228, %v229, %v230
        %v232 = vrot.slane %v217, 5
        %v233 = vrot.slane %v219, 5
        %v234 = vsel %vm228, %v232, %v233
        %v235 = vrot.slane %v220, 5
        %v236 = vsel %vm228, %v230, %v235
        %v237 = vrot.slane %v221, 5
        %v238 = vsel %vm228, %v233, %v237
        %243 = vrot.lane.b32.xlu0 %v231, 3
        %v244 = vpop.permute.xlu0 %243
        %245 = vrot.lane.b32.xlu0 %v236, 3
        %v246 = vpop.permute.xlu0 %245
        %247 = vrot.lane.b32.xlu0 %v234, 3
        %v248 = vpop.permute.xlu0 %247
        %249 = vrot.lane.b32.xlu0 %v238, 3
        %v250 = vpop.permute.xlu0 %249
        %v251 = vlaneseq
        %v252 = vand.u32 %v251, 127
        %vm253 = vcmp.lt.s32.totalorder %v252, 3
        %v254 = vsel %vm253, %v244, %v248
        %v255 = vsel %vm253, %v246, %v250
        %v256 = vsel %vm253, %v248, %v244
        %v257 = vsel %vm253, %v250, %v246
        %s258 = sld [smem:[#allocation7]]
        %s259 = sld [smem:[#allocation7 + $0x31]]
        %v260 = vstv %s258
        %v261 = vmul.f32 %v256, %v260
        %v262 = vmul.f32 %v257, %v260
        %v263 = vadd.f32 %v261, 0.0
        %v264 = vadd.f32 %v262, 0.0
        %v265 = vstv %s259
        %v266 = vmul.f32 %v254, %v265
        %v267 = vmul.f32 %v255, %v265
        %v268 = vadd.f32 %v263, %v266
        %v269 = vadd.f32 %v264, %v267
        %270 = vrot.lane.b32.xlu0 %v231, 2
        %v271 = vpop.permute.xlu0 %270
        %272 = vrot.lane.b32.xlu0 %v236, 2
        %v273 = vpop.permute.xlu0 %272
        %274 = vrot.lane.b32.xlu0 %v234, 2
        %v275 = vpop.permute.xlu0 %274
        %276 = vrot.lane.b32.xlu0 %v238, 2
        %v277 = vpop.permute.xlu0 %276
        %vm278 = vcmp.lt.s32.totalorder %v252, 2
        %v279 = vsel %vm278, %v271, %v275
        %v280 = vsel %vm278, %v273, %v277
        %v281 = vsel %vm278, %v275, %v271
        %v282 = vsel %vm278, %v277, %v273
        %s283 = sld [smem:[#allocation7 + $0x1]]
        %s284 = sld [smem:[#allocation7 + $0x32]]
        %v285 = vstv %s283
        %v286 = vmul.f32 %v281, %v285
        %v287 = vmul.f32 %v282, %v285
        %v288 = vadd.f32 %v268, %v286
        %v289 = vadd.f32 %v269, %v287
        %v290 = vstv %s284
        %v291 = vmul.f32 %v279, %v290
        %v292 = vmul.f32 %v280, %v290
        %v293 = vadd.f32 %v288, %v291
        %v294 = vadd.f32 %v289, %v292
        %295 = vrot.lane.b32.xlu0 %v231, 1
        %v296 = vpop.permute.xlu0 %295
        %297 = vrot.lane.b32.xlu0 %v236, 1
        %v298 = vpop.permute.xlu0 %297
        %299 = vrot.lane.b32.xlu0 %v234, 1
        %v300 = vpop.permute.xlu0 %299
        %301 = vrot.lane.b32.xlu0 %v238, 1
        %v302 = vpop.permute.xlu0 %301
        %vm303 = vcmp.lt.s32.totalorder %v252, 1
        %v304 = vsel %vm303, %v296, %v300
        %v305 = vsel %vm303, %v298, %v302
        %v306 = vsel %vm303, %v300, %v296
        %v307 = vsel %vm303, %v302, %v298
        %s308 = sld [smem:[#allocation7 + $0x2]]
        %s309 = sld [smem:[#allocation7 + $0x33]]
        %v310 = vstv %s308
        %v311 = vmul.f32 %v306, %v310
        %v312 = vmul.f32 %v307, %v310
        %v313 = vadd.f32 %v293, %v311
        %v314 = vadd.f32 %v294, %v312
        %v315 = vstv %s309
        %v316 = vmul.f32 %v304, %v315
        %v317 = vmul.f32 %v305, %v315
        %v318 = vadd.f32 %v313, %v316
        %v319 = vadd.f32 %v314, %v317
        %s320 = sld [smem:[#allocation7 + $0x3]]
        %s321 = sld [smem:[#allocation7 + $0x34]]
        %v322 = vstv %s320
        %v323 = vmul.f32 %v216, %v322
        %v324 = vmul.f32 %v218, %v322
        %v325 = vmul.f32 %v220, %v322
        %v329 = vrot.slane %v323, 5
        %v330 = vrot.slane %v324, 5
        %v331 = vsel %vm228, %v329, %v330
        %v332 = vrot.slane %v325, 5
        %v333 = vsel %vm228, %v330, %v332
        %v336 = vadd.f32 %v318, %v331
        %v337 = vadd.f32 %v319, %v333
        %v338 = vstv %s321
        %v339 = vmul.f32 %v217, %v338
        %v340 = vmul.f32 %v219, %v338
        %v341 = vmul.f32 %v221, %v338
        %v345 = vrot.slane %v339, 5
        %v346 = vrot.slane %v340, 5
        %v347 = vsel %vm228, %v345, %v346
        %v348 = vrot.slane %v341, 5
        %v349 = vsel %vm228, %v346, %v348
        %v352 = vadd.f32 %v336, %v347
        %v353 = vadd.f32 %v337, %v349
        %354 = vrot.lane.b32.xlu0 %v231, 127
        %v355 = vpop.permute.xlu0 %354
        %356 = vrot.lane.b32.xlu0 %v236, 127
        %v357 = vpop.permute.xlu0 %356
        %358 = vrot.lane.b32.xlu0 %v234, 127
        %v359 = vpop.permute.xlu0 %358
        %360 = vrot.lane.b32.xlu0 %v238, 127
        %v361 = vpop.permute.xlu0 %360
        %vm362 = vcmp.lt.s32.totalorder %v252, 127
        %v363 = vsel %vm362, %v355, %v359
        %v364 = vsel %vm362, %v357, %v361
        %v365 = vsel %vm362, %v359, %v355
        %v366 = vsel %vm362, %v361, %v357
        %s367 = sld [smem:[#allocation7 + $0x4]]
        %s368 = sld [smem:[#allocation7 + $0x35]]
        %v369 = vstv %s367
        %v370 = vmul.f32 %v363, %v369
        %v371 = vmul.f32 %v364, %v369
        %v372 = vadd.f32 %v352, %v370
        %v373 = vadd.f32 %v353, %v371
        %v374 = vstv %s368
        %v375 = vmul.f32 %v365, %v374
        %v376 = vmul.f32 %v366, %v374
        %v377 = vadd.f32 %v372, %v375
        %v378 = vadd.f32 %v373, %v376
        %379 = vrot.lane.b32.xlu0 %v231, 126
        %v380 = vpop.permute.xlu0 %379
        %381 = vrot.lane.b32.xlu0 %v236, 126
        %v382 = vpop.permute.xlu0 %381
        %383 = vrot.lane.b32.xlu0 %v234, 126
        %v384 = vpop.permute.xlu0 %383
        %385 = vrot.lane.b32.xlu0 %v238, 126
        %v386 = vpop.permute.xlu0 %385
        %vm387 = vcmp.lt.s32.totalorder %v252, 126
        %v388 = vsel %vm387, %v380, %v384
        %v389 = vsel %vm387, %v382, %v386
        %v390 = vsel %vm387, %v384, %v380
        %v391 = vsel %vm387, %v386, %v382
        %s392 = sld [smem:[#allocation7 + $0x5]]
        %s393 = sld [smem:[#allocation7 + $0x36]]
        %v394 = vstv %s392
        %v395 = vmul.f32 %v388, %v394
        %v396 = vmul.f32 %v389, %v394
        %v397 = vadd.f32 %v377, %v395
        %v398 = vadd.f32 %v378, %v396
        %v399 = vstv %s393
        %v400 = vmul.f32 %v390, %v399
        %v401 = vmul.f32 %v391, %v399
        %v402 = vadd.f32 %v397, %v400
        %v403 = vadd.f32 %v398, %v401
        %404 = vrot.lane.b32.xlu0 %v231, 125
        %v405 = vpop.permute.xlu0 %404
        %406 = vrot.lane.b32.xlu0 %v236, 125
        %v407 = vpop.permute.xlu0 %406
        %408 = vrot.lane.b32.xlu0 %v234, 125
        %v409 = vpop.permute.xlu0 %408
        %410 = vrot.lane.b32.xlu0 %v238, 125
        %v411 = vpop.permute.xlu0 %410
        %vm412 = vcmp.lt.s32.totalorder %v252, 125
        %v413 = vsel %vm412, %v405, %v409
        %v414 = vsel %vm412, %v407, %v411
        %v415 = vsel %vm412, %v409, %v405
        %v416 = vsel %vm412, %v411, %v407
        %s417 = sld [smem:[#allocation7 + $0x6]]
        %s418 = sld [smem:[#allocation7 + $0x37]]
        %v419 = vstv %s417
        %v420 = vmul.f32 %v413, %v419
        %v421 = vmul.f32 %v414, %v419
        %v422 = vadd.f32 %v402, %v420
        %v423 = vadd.f32 %v403, %v421
        %v424 = vstv %s418
        %v425 = vmul.f32 %v415, %v424
        %v426 = vmul.f32 %v416, %v424
        %v427 = vadd.f32 %v422, %v425
        %v428 = vadd.f32 %v423, %v426
        %v429 = vld [vmem:[#allocation2] sm:$0xc0]
        %v430 = vld [vmem:[#allocation2 + $0x8] sm:$0xc0]
        %vm433 = vcmask 1041408
        %v434 = vrot.slane %v429, 6
        %v435 = vrot.slane %v218, 6
        %v436 = vsel %vm433, %v434, %v435
        %v437 = vrot.slane %v430, 6
        %v438 = vrot.slane %v219, 6
        %v439 = vsel %vm433, %v437, %v438
        %v440 = vrot.slane %v220, 6
        %v441 = vsel %vm433, %v435, %v440
        %v442 = vrot.slane %v221, 6
        %v443 = vsel %vm433, %v438, %v442
        %448 = vrot.lane.b32.xlu0 %v436, 3
        %v449 = vpop.permute.xlu0 %448
        %450 = vrot.lane.b32.xlu0 %v441, 3
        %v451 = vpop.permute.xlu0 %450
        %452 = vrot.lane.b32.xlu0 %v439, 3
        %v453 = vpop.permute.xlu0 %452
        %454 = vrot.lane.b32.xlu0 %v443, 3
        %v455 = vpop.permute.xlu0 %454
        %v456 = vsel %vm253, %v449, %v453
        %v457 = vsel %vm253, %v451, %v455
        %v458 = vsel %vm253, %v453, %v449
        %v459 = vsel %vm253, %v455, %v451
        %s460 = sld [smem:[#allocation7 + $0x7]]
        %s461 = sld [smem:[#allocation7 + $0x38]]
        %v462 = vstv %s460
        %v463 = vmul.f32 %v458, %v462
        %v464 = vmul.f32 %v459, %v462
        %v465 = vadd.f32 %v427, %v463
        %v466 = vadd.f32 %v428, %v464
        %v467 = vstv %s461
        %v468 = vmul.f32 %v456, %v467
        %v469 = vmul.f32 %v457, %v467
        %v470 = vadd.f32 %v465, %v468
        %v471 = vadd.f32 %v466, %v469
        %472 = vrot.lane.b32.xlu0 %v436, 2
        %v473 = vpop.permute.xlu0 %472
        %474 = vrot.lane.b32.xlu0 %v441, 2
        %v475 = vpop.permute.xlu0 %474
        %476 = vrot.lane.b32.xlu0 %v439, 2
        %v477 = vpop.permute.xlu0 %476
        %478 = vrot.lane.b32.xlu0 %v443, 2
        %v479 = vpop.permute.xlu0 %478
        %v480 = vsel %vm278, %v473, %v477
        %v481 = vsel %vm278, %v475, %v479
        %v482 = vsel %vm278, %v477, %v473
        %v483 = vsel %vm278, %v479, %v475
        %s484 = sld [smem:[#allocation7 + $0x8]]
        %s485 = sld [smem:[#allocation7 + $0x39]]
        %v486 = vstv %s484
        %v487 = vmul.f32 %v482, %v486
        %v488 = vmul.f32 %v483, %v486
        %v489 = vadd.f32 %v470, %v487
        %v490 = vadd.f32 %v471, %v488
        %v491 = vstv %s485
        %v492 = vmul.f32 %v480, %v491
        %v493 = vmul.f32 %v481, %v491
        %v494 = vadd.f32 %v489, %v492
        %v495 = vadd.f32 %v490, %v493
        %496 = vrot.lane.b32.xlu0 %v436, 1
        %v497 = vpop.permute.xlu0 %496
        %498 = vrot.lane.b32.xlu0 %v441, 1
        %v499 = vpop.permute.xlu0 %498
        %500 = vrot.lane.b32.xlu0 %v439, 1
        %v501 = vpop.permute.xlu0 %500
        %502 = vrot.lane.b32.xlu0 %v443, 1
        %v503 = vpop.permute.xlu0 %502
        %v504 = vsel %vm303, %v497, %v501
        %v505 = vsel %vm303, %v499, %v503
        %v506 = vsel %vm303, %v501, %v497
        %v507 = vsel %vm303, %v503, %v499
        %s508 = sld [smem:[#allocation7 + $0x9]]
        %s509 = sld [smem:[#allocation7 + $0x3a]]
        %v510 = vstv %s508
        %v511 = vmul.f32 %v506, %v510
        %v512 = vmul.f32 %v507, %v510
        %v513 = vadd.f32 %v494, %v511
        %v514 = vadd.f32 %v495, %v512
        %v515 = vstv %s509
        %v516 = vmul.f32 %v504, %v515
        %v517 = vmul.f32 %v505, %v515
        %v518 = vadd.f32 %v513, %v516
        %v519 = vadd.f32 %v514, %v517
        %s520 = sld [smem:[#allocation7 + $0xa]]
        %s521 = sld [smem:[#allocation7 + $0x3b]]
        %v522 = vstv %s520
        %v523 = vmul.f32 %v429, %v522
        %v524 = vmul.f32 %v218, %v522
        %v525 = vmul.f32 %v220, %v522
        %v529 = vrot.slane %v523, 6
        %v530 = vrot.slane %v524, 6
        %v531 = vsel %vm433, %v529, %v530
        %v532 = vrot.slane %v525, 6
        %v533 = vsel %vm433, %v530, %v532
        %v536 = vadd.f32 %v518, %v531
        %v537 = vadd.f32 %v519, %v533
        %v538 = vstv %s521
        %v539 = vmul.f32 %v430, %v538
        %v540 = vmul.f32 %v219, %v538
        %v541 = vmul.f32 %v221, %v538
        %v545 = vrot.slane %v539, 6
        %v546 = vrot.slane %v540, 6
        %v547 = vsel %vm433, %v545, %v546
        %v548 = vrot.slane %v541, 6
        %v549 = vsel %vm433, %v546, %v548
        %v552 = vadd.f32 %v536, %v547
        %v553 = vadd.f32 %v537, %v549
        %554 = vrot.lane.b32.xlu0 %v436, 127
        %v555 = vpop.permute.xlu0 %554
        %556 = vrot.lane.b32.xlu0 %v441, 127
        %v557 = vpop.permute.xlu0 %556
        %558 = vrot.lane.b32.xlu0 %v439, 127
        %v559 = vpop.permute.xlu0 %558
        %560 = vrot.lane.b32.xlu0 %v443, 127
        %v561 = vpop.permute.xlu0 %560
        %v562 = vsel %vm362, %v555, %v559
        %v563 = vsel %vm362, %v557, %v561
        %v564 = vsel %vm362, %v559, %v555
        %v565 = vsel %vm362, %v561, %v557
        %s566 = sld [smem:[#allocation7 + $0xb]]
        %s567 = sld [smem:[#allocation7 + $0x3c]]
        %v568 = vstv %s566
        %v569 = vmul.f32 %v562, %v568
        %v570 = vmul.f32 %v563, %v568
        %v571 = vadd.f32 %v552, %v569
        %v572 = vadd.f32 %v553, %v570
        %v573 = vstv %s567
        %v574 = vmul.f32 %v564, %v573
        %v575 = vmul.f32 %v565, %v573
        %v576 = vadd.f32 %v571, %v574
        %v577 = vadd.f32 %v572, %v575
        %578 = vrot.lane.b32.xlu0 %v436, 126
        %v579 = vpop.permute.xlu0 %578
        %580 = vrot.lane.b32.xlu0 %v441, 126
        %v581 = vpop.permute.xlu0 %580
        %582 = vrot.lane.b32.xlu0 %v439, 126
        %v583 = vpop.permute.xlu0 %582
        %584 = vrot.lane.b32.xlu0 %v443, 126
        %v585 = vpop.permute.xlu0 %584
        %v586 = vsel %vm387, %v579, %v583
        %v587 = vsel %vm387, %v581, %v585
        %v588 = vsel %vm387, %v583, %v579
        %v589 = vsel %vm387, %v585, %v581
        %s590 = sld [smem:[#allocation7 + $0xc]]
        %s591 = sld [smem:[#allocation7 + $0x3d]]
        %v592 = vstv %s590
        %v593 = vmul.f32 %v586, %v592
        %v594 = vmul.f32 %v587, %v592
        %v595 = vadd.f32 %v576, %v593
        %v596 = vadd.f32 %v577, %v594
        %v597 = vstv %s591
        %v598 = vmul.f32 %v588, %v597
        %v599 = vmul.f32 %v589, %v597
        %v600 = vadd.f32 %v595, %v598
        %v601 = vadd.f32 %v596, %v599
        %602 = vrot.lane.b32.xlu0 %v436, 125
        %v603 = vpop.permute.xlu0 %602
        %604 = vrot.lane.b32.xlu0 %v441, 125
        %v605 = vpop.permute.xlu0 %604
        %606 = vrot.lane.b32.xlu0 %v439, 125
        %v607 = vpop.permute.xlu0 %606
        %608 = vrot.lane.b32.xlu0 %v443, 125
        %v609 = vpop.permute.xlu0 %608
        %v610 = vsel %vm412, %v603, %v607
        %v611 = vsel %vm412, %v605, %v609
        %v612 = vsel %vm412, %v607, %v603
        %v613 = vsel %vm412, %v609, %v605
        %s614 = sld [smem:[#allocation7 + $0xd]]
        %s615 = sld [smem:[#allocation7 + $0x3e]]
        %v616 = vstv %s614
        %v617 = vmul.f32 %v610, %v616
        %v618 = vmul.f32 %v611, %v616
        %v619 = vadd.f32 %v600, %v617
        %v620 = vadd.f32 %v601, %v618
        %v621 = vstv %s615
        %v622 = vmul.f32 %v612, %v621
        %v623 = vmul.f32 %v613, %v621
        %v624 = vadd.f32 %v619, %v622
        %v625 = vadd.f32 %v620, %v623
        %v626 = vld [vmem:[#allocation2] sm:$0x80]
        %v627 = vld [vmem:[#allocation2 + $0x8] sm:$0x80]
        %vm630 = vcmask 1040384
        %v631 = vrot.slane %v626, 7
        %v632 = vrot.slane %v218, 7
        %v633 = vsel %vm630, %v631, %v632
        %v634 = vrot.slane %v627, 7
        %v635 = vrot.slane %v219, 7
        %v636 = vsel %vm630, %v634, %v635
        %v637 = vrot.slane %v220, 7
        %v638 = vsel %vm630, %v632, %v637
        %v639 = vrot.slane %v221, 7
        %v640 = vsel %vm630, %v635, %v639
        %645 = vrot.lane.b32.xlu0 %v633, 3
        %v646 = vpop.permute.xlu0 %645
        %647 = vrot.lane.b32.xlu0 %v638, 3
        %v648 = vpop.permute.xlu0 %647
        %649 = vrot.lane.b32.xlu0 %v636, 3
        %v650 = vpop.permute.xlu0 %649
        %651 = vrot.lane.b32.xlu0 %v640, 3
        %v652 = vpop.permute.xlu0 %651
        %v653 = vsel %vm253, %v646, %v650
        %v654 = vsel %vm253, %v648, %v652
        %v655 = vsel %vm253, %v650, %v646
        %v656 = vsel %vm253, %v652, %v648
        %s657 = sld [smem:[#allocation7 + $0xe]]
        %s658 = sld [smem:[#allocation7 + $0x3f]]
        %v659 = vstv %s657
        %v660 = vmul.f32 %v655, %v659
        %v661 = vmul.f32 %v656, %v659
        %v662 = vadd.f32 %v624, %v660
        %v663 = vadd.f32 %v625, %v661
        %v664 = vstv %s658
        %v665 = vmul.f32 %v653, %v664
        %v666 = vmul.f32 %v654, %v664
        %v667 = vadd.f32 %v662, %v665
        %v668 = vadd.f32 %v663, %v666
        %669 = vrot.lane.b32.xlu0 %v633, 2
        %v670 = vpop.permute.xlu0 %669
        %671 = vrot.lane.b32.xlu0 %v638, 2
        %v672 = vpop.permute.xlu0 %671
        %673 = vrot.lane.b32.xlu0 %v636, 2
        %v674 = vpop.permute.xlu0 %673
        %675 = vrot.lane.b32.xlu0 %v640, 2
        %v676 = vpop.permute.xlu0 %675
        %v677 = vsel %vm278, %v670, %v674
        %v678 = vsel %vm278, %v672, %v676
        %v679 = vsel %vm278, %v674, %v670
        %v680 = vsel %vm278, %v676, %v672
        %s681 = sld [smem:[#allocation7 + $0xf]]
        %s682 = sld [smem:[#allocation7 + $0x40]]
        %v683 = vstv %s681
        %v684 = vmul.f32 %v679, %v683
        %v685 = vmul.f32 %v680, %v683
        %v686 = vadd.f32 %v667, %v684
        %v687 = vadd.f32 %v668, %v685
        %v688 = vstv %s682
        %v689 = vmul.f32 %v677, %v688
        %v690 = vmul.f32 %v678, %v688
        %v691 = vadd.f32 %v686, %v689
        %v692 = vadd.f32 %v687, %v690
        %693 = vrot.lane.b32.xlu0 %v633, 1
        %v694 = vpop.permute.xlu0 %693
        %695 = vrot.lane.b32.xlu0 %v638, 1
        %v696 = vpop.permute.xlu0 %695
        %697 = vrot.lane.b32.xlu0 %v636, 1
        %v698 = vpop.permute.xlu0 %697
        %699 = vrot.lane.b32.xlu0 %v640, 1
        %v700 = vpop.permute.xlu0 %699
        %v701 = vsel %vm303, %v694, %v698
        %v702 = vsel %vm303, %v696, %v700
        %v703 = vsel %vm303, %v698, %v694
        %v704 = vsel %vm303, %v700, %v696
        %s705 = sld [smem:[#allocation7 + $0x10]]
        %s706 = sld [smem:[#allocation7 + $0x41]]
        %v707 = vstv %s705
        %v708 = vmul.f32 %v703, %v707
        %v709 = vmul.f32 %v704, %v707
        %v710 = vadd.f32 %v691, %v708
        %v711 = vadd.f32 %v692, %v709
        %v712 = vstv %s706
        %v713 = vmul.f32 %v701, %v712
        %v714 = vmul.f32 %v702, %v712
        %v715 = vadd.f32 %v710, %v713
        %v716 = vadd.f32 %v711, %v714
        %s717 = sld [smem:[#allocation7 + $0x11]]
        %s718 = sld [smem:[#allocation7 + $0x42]]
        %v719 = vstv %s717
        %v720 = vmul.f32 %v626, %v719
        %v721 = vmul.f32 %v218, %v719
        %v722 = vmul.f32 %v220, %v719
        %v726 = vrot.slane %v720, 7
        %v727 = vrot.slane %v721, 7
        %v728 = vsel %vm630, %v726, %v727
        %v729 = vrot.slane %v722, 7
        %v730 = vsel %vm630, %v727, %v729
        %v733 = vadd.f32 %v715, %v728
        %v734 = vadd.f32 %v716, %v730
        %v735 = vstv %s718
        %v736 = vmul.f32 %v627, %v735
        %v737 = vmul.f32 %v219, %v735
        %v738 = vmul.f32 %v221, %v735
        %v742 = vrot.slane %v736, 7
        %v743 = vrot.slane %v737, 7
        %v744 = vsel %vm630, %v742, %v743
        %v745 = vrot.slane %v738, 7
        %v746 = vsel %vm630, %v743, %v745
        %v749 = vadd.f32 %v733, %v744
        %v750 = vadd.f32 %v734, %v746
        %751 = vrot.lane.b32.xlu0 %v633, 127
        %v752 = vpop.permute.xlu0 %751
        %753 = vrot.lane.b32.xlu0 %v638, 127
        %v754 = vpop.permute.xlu0 %753
        %755 = vrot.lane.b32.xlu0 %v636, 127
        %v756 = vpop.permute.xlu0 %755
        %757 = vrot.lane.b32.xlu0 %v640, 127
        %v758 = vpop.permute.xlu0 %757
        %v759 = vsel %vm362, %v752, %v756
        %v760 = vsel %vm362, %v754, %v758
        %v761 = vsel %vm362, %v756, %v752
        %v762 = vsel %vm362, %v758, %v754
        %s763 = sld [smem:[#allocation7 + $0x12]]
        %s764 = sld [smem:[#allocation7 + $0x43]]
        %v765 = vstv %s763
        %v766 = vmul.f32 %v759, %v765
        %v767 = vmul.f32 %v760, %v765
        %v768 = vadd.f32 %v749, %v766
        %v769 = vadd.f32 %v750, %v767
        %v770 = vstv %s764
        %v771 = vmul.f32 %v761, %v770
        %v772 = vmul.f32 %v762, %v770
        %v773 = vadd.f32 %v768, %v771
        %v774 = vadd.f32 %v769, %v772
        %775 = vrot.lane.b32.xlu0 %v633, 126
        %v776 = vpop.permute.xlu0 %775
        %777 = vrot.lane.b32.xlu0 %v638, 126
        %v778 = vpop.permute.xlu0 %777
        %779 = vrot.lane.b32.xlu0 %v636, 126
        %v780 = vpop.permute.xlu0 %779
        %781 = vrot.lane.b32.xlu0 %v640, 126
        %v782 = vpop.permute.xlu0 %781
        %v783 = vsel %vm387, %v776, %v780
        %v784 = vsel %vm387, %v778, %v782
        %v785 = vsel %vm387, %v780, %v776
        %v786 = vsel %vm387, %v782, %v778
        %s787 = sld [smem:[#allocation7 + $0x13]]
        %s788 = sld [smem:[#allocation7 + $0x44]]
        %v789 = vstv %s787
        %v790 = vmul.f32 %v783, %v789
        %v791 = vmul.f32 %v784, %v789
        %v792 = vadd.f32 %v773, %v790
        %v793 = vadd.f32 %v774, %v791
        %v794 = vstv %s788
        %v795 = vmul.f32 %v785, %v794
        %v796 = vmul.f32 %v786, %v794
        %v797 = vadd.f32 %v792, %v795
        %v798 = vadd.f32 %v793, %v796
        %799 = vrot.lane.b32.xlu0 %v633, 125
        %v800 = vpop.permute.xlu0 %799
        %801 = vrot.lane.b32.xlu0 %v638, 125
        %v802 = vpop.permute.xlu0 %801
        %803 = vrot.lane.b32.xlu0 %v636, 125
        %v804 = vpop.permute.xlu0 %803
        %805 = vrot.lane.b32.xlu0 %v640, 125
        %v806 = vpop.permute.xlu0 %805
        %v807 = vsel %vm412, %v800, %v804
        %v808 = vsel %vm412, %v802, %v806
        %v809 = vsel %vm412, %v804, %v800
        %v810 = vsel %vm412, %v806, %v802
        %s811 = sld [smem:[#allocation7 + $0x14]]
        %s812 = sld [smem:[#allocation7 + $0x45]]
        %v813 = vstv %s811
        %v814 = vmul.f32 %v807, %v813
        %v815 = vmul.f32 %v808, %v813
        %v816 = vadd.f32 %v797, %v814
        %v817 = vadd.f32 %v798, %v815
        %v818 = vstv %s812
        %v819 = vmul.f32 %v809, %v818
        %v820 = vmul.f32 %v810, %v818
        %v821 = vadd.f32 %v816, %v819
        %v822 = vadd.f32 %v817, %v820
        %823 = vrot.lane.b32.xlu0 %v218, 3
        %v824 = vpop.permute.xlu0 %823
        %825 = vrot.lane.b32.xlu0 %v220, 3
        %v826 = vpop.permute.xlu0 %825
        %827 = vrot.lane.b32.xlu0 %v219, 3
        %v828 = vpop.permute.xlu0 %827
        %829 = vrot.lane.b32.xlu0 %v221, 3
        %v830 = vpop.permute.xlu0 %829
        %v831 = vsel %vm253, %v824, %v828
        %v832 = vsel %vm253, %v826, %v830
        %v833 = vsel %vm253, %v828, %v824
        %v834 = vsel %vm253, %v830, %v826
        %s835 = sld [smem:[#allocation7 + $0x15]]
        %s836 = sld [smem:[#allocation7 + $0x46]]
        %v837 = vstv %s835
        %v838 = vmul.f32 %v833, %v837
        %v839 = vmul.f32 %v834, %v837
        %v840 = vadd.f32 %v821, %v838
        %v841 = vadd.f32 %v822, %v839
        %v842 = vstv %s836
        %v843 = vmul.f32 %v831, %v842
        %v844 = vmul.f32 %v832, %v842
        %v845 = vadd.f32 %v840, %v843
        %v846 = vadd.f32 %v841, %v844
        %847 = vrot.lane.b32.xlu0 %v218, 2
        %v848 = vpop.permute.xlu0 %847
        %849 = vrot.lane.b32.xlu0 %v220, 2
        %v850 = vpop.permute.xlu0 %849
        %851 = vrot.lane.b32.xlu0 %v219, 2
        %v852 = vpop.permute.xlu0 %851
        %853 = vrot.lane.b32.xlu0 %v221, 2
        %v854 = vpop.permute.xlu0 %853
        %v855 = vsel %vm278, %v848, %v852
        %v856 = vsel %vm278, %v850, %v854
        %v857 = vsel %vm278, %v852, %v848
        %v858 = vsel %vm278, %v854, %v850
        %s859 = sld [smem:[#allocation7 + $0x16]]
        %s860 = sld [smem:[#allocation7 + $0x47]]
        %v861 = vstv %s859
        %v862 = vmul.f32 %v857, %v861
        %v863 = vmul.f32 %v858, %v861
        %v864 = vadd.f32 %v845, %v862
        %v865 = vadd.f32 %v846, %v863
        %v866 = vstv %s860
        %v867 = vmul.f32 %v855, %v866
        %v868 = vmul.f32 %v856, %v866
        %v869 = vadd.f32 %v864, %v867
        %v870 = vadd.f32 %v865, %v868
        %871 = vrot.lane.b32.xlu0 %v218, 1
        %v872 = vpop.permute.xlu0 %871
        %873 = vrot.lane.b32.xlu0 %v220, 1
        %v874 = vpop.permute.xlu0 %873
        %875 = vrot.lane.b32.xlu0 %v219, 1
        %v876 = vpop.permute.xlu0 %875
        %877 = vrot.lane.b32.xlu0 %v221, 1
        %v878 = vpop.permute.xlu0 %877
        %v879 = vsel %vm303, %v872, %v876
        %v880 = vsel %vm303, %v874, %v878
        %v881 = vsel %vm303, %v876, %v872
        %v882 = vsel %vm303, %v878, %v874
        %s883 = sld [smem:[#allocation7 + $0x17]]
        %s884 = sld [smem:[#allocation7 + $0x48]]
        %v885 = vstv %s883
        %v886 = vmul.f32 %v881, %v885
        %v887 = vmul.f32 %v882, %v885
        %v888 = vadd.f32 %v869, %v886
        %v889 = vadd.f32 %v870, %v887
        %v890 = vstv %s884
        %v891 = vmul.f32 %v879, %v890
        %v892 = vmul.f32 %v880, %v890
        %v893 = vadd.f32 %v888, %v891
        %v894 = vadd.f32 %v889, %v892
        %s895 = sld [smem:[#allocation7 + $0x18]]
        %s896 = sld [smem:[#allocation7 + $0x49]]
        %v897 = vstv %s895
        %v898 = vmul.f32 %v218, %v897
        %v899 = vmul.f32 %v220, %v897
        %v900 = vadd.f32 %v893, %v898
        %v901 = vadd.f32 %v894, %v899
        %v902 = vstv %s896
        %v903 = vmul.f32 %v219, %v902
        %v904 = vmul.f32 %v221, %v902
        %v905 = vadd.f32 %v900, %v903
        %v906 = vadd.f32 %v901, %v904
        %907 = vrot.lane.b32.xlu0 %v218, 127
        %v908 = vpop.permute.xlu0 %907
        %909 = vrot.lane.b32.xlu0 %v220, 127
        %v910 = vpop.permute.xlu0 %909
        %911 = vrot.lane.b32.xlu0 %v219, 127
        %v912 = vpop.permute.xlu0 %911
        %913 = vrot.lane.b32.xlu0 %v221, 127
        %v914 = vpop.permute.xlu0 %913
        %v915 = vsel %vm362, %v908, %v912
        %v916 = vsel %vm362, %v910, %v914
        %v917 = vsel %vm362, %v912, %v908
        %v918 = vsel %vm362, %v914, %v910
        %s919 = sld [smem:[#allocation7 + $0x19]]
        %s920 = sld [smem:[#allocation7 + $0x4a]]
        %v921 = vstv %s919
        %v922 = vmul.f32 %v915, %v921
        %v923 = vmul.f32 %v916, %v921
        %v924 = vadd.f32 %v905, %v922
        %v925 = vadd.f32 %v906, %v923
        %v926 = vstv %s920
        %v927 = vmul.f32 %v917, %v926
        %v928 = vmul.f32 %v918, %v926
        %v929 = vadd.f32 %v924, %v927
        %v930 = vadd.f32 %v925, %v928
        %931 = vrot.lane.b32.xlu0 %v218, 126
        %v932 = vpop.permute.xlu0 %931
        %933 = vrot.lane.b32.xlu0 %v220, 126
        %v934 = vpop.permute.xlu0 %933
        %935 = vrot.lane.b32.xlu0 %v219, 126
        %v936 = vpop.permute.xlu0 %935
        %937 = vrot.lane.b32.xlu0 %v221, 126
        %v938 = vpop.permute.xlu0 %937
        %v939 = vsel %vm387, %v932, %v936
        %v940 = vsel %vm387, %v934, %v938
        %v941 = vsel %vm387, %v936, %v932
        %v942 = vsel %vm387, %v938, %v934
        %s943 = sld [smem:[#allocation7 + $0x1a]]
        %s944 = sld [smem:[#allocation7 + $0x4b]]
        %v945 = vstv %s943
        %v946 = vmul.f32 %v939, %v945
        %v947 = vmul.f32 %v940, %v945
        %v948 = vadd.f32 %v929, %v946
        %v949 = vadd.f32 %v930, %v947
        %v950 = vstv %s944
        %v951 = vmul.f32 %v941, %v950
        %v952 = vmul.f32 %v942, %v950
        %v953 = vadd.f32 %v948, %v951
        %v954 = vadd.f32 %v949, %v952
        %955 = vrot.lane.b32.xlu0 %v218, 125
        %v956 = vpop.permute.xlu0 %955
        %957 = vrot.lane.b32.xlu0 %v220, 125
        %v958 = vpop.permute.xlu0 %957
        %959 = vrot.lane.b32.xlu0 %v219, 125
        %v960 = vpop.permute.xlu0 %959
        %961 = vrot.lane.b32.xlu0 %v221, 125
        %v962 = vpop.permute.xlu0 %961
        %v963 = vsel %vm412, %v956, %v960
        %v964 = vsel %vm412, %v958, %v962
        %v965 = vsel %vm412, %v960, %v956
        %v966 = vsel %vm412, %v962, %v958
        %s967 = sld [smem:[#allocation7 + $0x1b]]
        %s968 = sld [smem:[#allocation7 + $0x4c]]
        %v969 = vstv %s967
        %v970 = vmul.f32 %v963, %v969
        %v971 = vmul.f32 %v964, %v969
        %v972 = vadd.f32 %v953, %v970
        %v973 = vadd.f32 %v954, %v971
        %v974 = vstv %s968
        %v975 = vmul.f32 %v965, %v974
        %v976 = vmul.f32 %v966, %v974
        %v977 = vadd.f32 %v972, %v975
        %v978 = vadd.f32 %v973, %v976
        %v979 = vld [vmem:[#allocation2 + $0x10] sm:$0xfe]
        %v980 = vld [vmem:[#allocation2 + $0x18] sm:$0xfe]
        %v981 = vld [vmem:[#allocation2 + $0x20] sm:$0xff]
        %v982 = vld [vmem:[#allocation2 + $0x28] sm:$0xff]
        %v983 = vld [vmem:[#allocation2 + $0x30] sm:$0xff]
        %v984 = vld [vmem:[#allocation2 + $0x38] sm:$0xff]
        %vm991 = vcmask 1046528
        %v992 = vrot.slane %v979, 1
        %v993 = vrot.slane %v981, 1
        %v994 = vsel %vm991, %v992, %v993
        %v995 = vrot.slane %v980, 1
        %v996 = vrot.slane %v982, 1
        %v997 = vsel %vm991, %v995, %v996
        %v998 = vrot.slane %v983, 1
        %v999 = vsel %vm991, %v993, %v998
        %v1000 = vrot.slane %v984, 1
        %v1001 = vsel %vm991, %v996, %v1000
        %1006 = vrot.lane.b32.xlu0 %v994, 3
        %v1007 = vpop.permute.xlu0 %1006
        %1008 = vrot.lane.b32.xlu0 %v999, 3
        %v1009 = vpop.permute.xlu0 %1008
        %1010 = vrot.lane.b32.xlu0 %v997, 3
        %v1011 = vpop.permute.xlu0 %1010
        %1012 = vrot.lane.b32.xlu0 %v1001, 3
        %v1013 = vpop.permute.xlu0 %1012
        %v1014 = vsel %vm253, %v1007, %v1011
        %v1015 = vsel %vm253, %v1009, %v1013
        %v1016 = vsel %vm253, %v1011, %v1007
        %v1017 = vsel %vm253, %v1013, %v1009
        %s1018 = sld [smem:[#allocation7 + $0x1c]]
        %s1019 = sld [smem:[#allocation7 + $0x4d]]
        %v1020 = vstv %s1018
        %v1021 = vmul.f32 %v1016, %v1020
        %v1022 = vmul.f32 %v1017, %v1020
        %v1023 = vadd.f32 %v977, %v1021
        %v1024 = vadd.f32 %v978, %v1022
        %v1025 = vstv %s1019
        %v1026 = vmul.f32 %v1014, %v1025
        %v1027 = vmul.f32 %v1015, %v1025
        %v1028 = vadd.f32 %v1023, %v1026
        %v1029 = vadd.f32 %v1024, %v1027
        %1030 = vrot.lane.b32.xlu0 %v994, 2
        %v1031 = vpop.permute.xlu0 %1030
        %1032 = vrot.lane.b32.xlu0 %v999, 2
        %v1033 = vpop.permute.xlu0 %1032
        %1034 = vrot.lane.b32.xlu0 %v997, 2
        %v1035 = vpop.permute.xlu0 %1034
        %1036 = vrot.lane.b32.xlu0 %v1001, 2
        %v1037 = vpop.permute.xlu0 %1036
        %v1038 = vsel %vm278, %v1031, %v1035
        %v1039 = vsel %vm278, %v1033, %v1037
        %v1040 = vsel %vm278, %v1035, %v1031
        %v1041 = vsel %vm278, %v1037, %v1033
        %s1042 = sld [smem:[#allocation7 + $0x1d]]
        %s1043 = sld [smem:[#allocation7 + $0x4e]]
        %v1044 = vstv %s1042
        %v1045 = vmul.f32 %v1040, %v1044
        %v1046 = vmul.f32 %v1041, %v1044
        %v1047 = vadd.f32 %v1028, %v1045
        %v1048 = vadd.f32 %v1029, %v1046
        %v1049 = vstv %s1043
        %v1050 = vmul.f32 %v1038, %v1049
        %v1051 = vmul.f32 %v1039, %v1049
        %v1052 = vadd.f32 %v1047, %v1050
        %v1053 = vadd.f32 %v1048, %v1051
        %1054 = vrot.lane.b32.xlu0 %v994, 1
        %v1055 = vpop.permute.xlu0 %1054
        %1056 = vrot.lane.b32.xlu0 %v999, 1
        %v1057 = vpop.permute.xlu0 %1056
        %1058 = vrot.lane.b32.xlu0 %v997, 1
        %v1059 = vpop.permute.xlu0 %1058
        %1060 = vrot.lane.b32.xlu0 %v1001, 1
        %v1061 = vpop.permute.xlu0 %1060
        %v1062 = vsel %vm303, %v1055, %v1059
        %v1063 = vsel %vm303, %v1057, %v1061
        %v1064 = vsel %vm303, %v1059, %v1055
        %v1065 = vsel %vm303, %v1061, %v1057
        %s1066 = sld [smem:[#allocation7 + $0x1e]]
        %s1067 = sld [smem:[#allocation7 + $0x4f]]
        %v1068 = vstv %s1066
        %v1069 = vmul.f32 %v1064, %v1068
        %v1070 = vmul.f32 %v1065, %v1068
        %v1071 = vadd.f32 %v1052, %v1069
        %v1072 = vadd.f32 %v1053, %v1070
        %v1073 = vstv %s1067
        %v1074 = vmul.f32 %v1062, %v1073
        %v1075 = vmul.f32 %v1063, %v1073
        %v1076 = vadd.f32 %v1071, %v1074
        %v1077 = vadd.f32 %v1072, %v1075
        %s1078 = sld [smem:[#allocation7 + $0x1f]]
        %s1079 = sld [smem:[#allocation7 + $0x50]]
        %v1080 = vstv %s1078
        %v1081 = vmul.f32 %v979, %v1080
        %v1082 = vmul.f32 %v981, %v1080
        %v1083 = vmul.f32 %v983, %v1080
        %v1087 = vrot.slane %v1081, 1
        %v1088 = vrot.slane %v1082, 1
        %v1089 = vsel %vm991, %v1087, %v1088
        %v1090 = vrot.slane %v1083, 1
        %v1091 = vsel %vm991, %v1088, %v1090
        %v1094 = vadd.f32 %v1076, %v1089
        %v1095 = vadd.f32 %v1077, %v1091
        %v1096 = vstv %s1079
        %v1097 = vmul.f32 %v980, %v1096
        %v1098 = vmul.f32 %v982, %v1096
        %v1099 = vmul.f32 %v984, %v1096
        %v1103 = vrot.slane %v1097, 1
        %v1104 = vrot.slane %v1098, 1
        %v1105 = vsel %vm991, %v1103, %v1104
        %v1106 = vrot.slane %v1099, 1
        %v1107 = vsel %vm991, %v1104, %v1106
        %v1110 = vadd.f32 %v1094, %v1105
        %v1111 = vadd.f32 %v1095, %v1107
        %1112 = vrot.lane.b32.xlu0 %v994, 127
        %v1113 = vpop.permute.xlu0 %1112
        %1114 = vrot.lane.b32.xlu0 %v999, 127
        %v1115 = vpop.permute.xlu0 %1114
        %1116 = vrot.lane.b32.xlu0 %v997, 127
        %v1117 = vpop.permute.xlu0 %1116
        %1118 = vrot.lane.b32.xlu0 %v1001, 127
        %v1119 = vpop.permute.xlu0 %1118
        %v1120 = vsel %vm362, %v1113, %v1117
        %v1121 = vsel %vm362, %v1115, %v1119
        %v1122 = vsel %vm362, %v1117, %v1113
        %v1123 = vsel %vm362, %v1119, %v1115
        %s1124 = sld [smem:[#allocation7 + $0x20]]
        %s1125 = sld [smem:[#allocation7 + $0x51]]
        %v1126 = vstv %s1124
        %v1127 = vmul.f32 %v1120, %v1126
        %v1128 = vmul.f32 %v1121, %v1126
        %v1129 = vadd.f32 %v1110, %v1127
        %v1130 = vadd.f32 %v1111, %v1128
        %v1131 = vstv %s1125
        %v1132 = vmul.f32 %v1122, %v1131
        %v1133 = vmul.f32 %v1123, %v1131
        %v1134 = vadd.f32 %v1129, %v1132
        %v1135 = vadd.f32 %v1130, %v1133
        %1136 = vrot.lane.b32.xlu0 %v994, 126
        %v1137 = vpop.permute.xlu0 %1136
        %1138 = vrot.lane.b32.xlu0 %v999, 126
        %v1139 = vpop.permute.xlu0 %1138
        %1140 = vrot.lane.b32.xlu0 %v997, 126
        %v1141 = vpop.permute.xlu0 %1140
        %1142 = vrot.lane.b32.xlu0 %v1001, 126
        %v1143 = vpop.permute.xlu0 %1142
        %v1144 = vsel %vm387, %v1137, %v1141
        %v1145 = vsel %vm387, %v1139, %v1143
        %v1146 = vsel %vm387, %v1141, %v1137
        %v1147 = vsel %vm387, %v1143, %v1139
        %s1148 = sld [smem:[#allocation7 + $0x21]]
        %s1149 = sld [smem:[#allocation7 + $0x52]]
        %v1150 = vstv %s1148
        %v1151 = vmul.f32 %v1144, %v1150
        %v1152 = vmul.f32 %v1145, %v1150
        %v1153 = vadd.f32 %v1134, %v1151
        %v1154 = vadd.f32 %v1135, %v1152
        %v1155 = vstv %s1149
        %v1156 = vmul.f32 %v1146, %v1155
        %v1157 = vmul.f32 %v1147, %v1155
        %v1158 = vadd.f32 %v1153, %v1156
        %v1159 = vadd.f32 %v1154, %v1157
        %1160 = vrot.lane.b32.xlu0 %v994, 125
        %v1161 = vpop.permute.xlu0 %1160
        %1162 = vrot.lane.b32.xlu0 %v999, 125
        %v1163 = vpop.permute.xlu0 %1162
        %1164 = vrot.lane.b32.xlu0 %v997, 125
        %v1165 = vpop.permute.xlu0 %1164
        %1166 = vrot.lane.b32.xlu0 %v1001, 125
        %v1167 = vpop.permute.xlu0 %1166
        %v1168 = vsel %vm412, %v1161, %v1165
        %v1169 = vsel %vm412, %v1163, %v1167
        %v1170 = vsel %vm412, %v1165, %v1161
        %v1171 = vsel %vm412, %v1167, %v1163
        %s1172 = sld [smem:[#allocation7 + $0x22]]
        %s1173 = sld [smem:[#allocation7 + $0x53]]
        %v1174 = vstv %s1172
        %v1175 = vmul.f32 %v1168, %v1174
        %v1176 = vmul.f32 %v1169, %v1174
        %v1177 = vadd.f32 %v1158, %v1175
        %v1178 = vadd.f32 %v1159, %v1176
        %v1179 = vstv %s1173
        %v1180 = vmul.f32 %v1170, %v1179
        %v1181 = vmul.f32 %v1171, %v1179
        %v1182 = vadd.f32 %v1177, %v1180
        %v1183 = vadd.f32 %v1178, %v1181
        %v1184 = vld [vmem:[#allocation2 + $0x10] sm:$0xfc]
        %v1185 = vld [vmem:[#allocation2 + $0x18] sm:$0xfc]
        %vm1188 = vcmask 1045504
        %v1189 = vrot.slane %v1184, 2
        %v1190 = vrot.slane %v981, 2
        %v1191 = vsel %vm1188, %v1189, %v1190
        %v1192 = vrot.slane %v1185, 2
        %v1193 = vrot.slane %v982, 2
        %v1194 = vsel %vm1188, %v1192, %v1193
        %v1195 = vrot.slane %v983, 2
        %v1196 = vsel %vm1188, %v1190, %v1195
        %v1197 = vrot.slane %v984, 2
        %v1198 = vsel %vm1188, %v1193, %v1197
        %1203 = vrot.lane.b32.xlu0 %v1191, 3
        %v1204 = vpop.permute.xlu0 %1203
        %1205 = vrot.lane.b32.xlu0 %v1196, 3
        %v1206 = vpop.permute.xlu0 %1205
        %1207 = vrot.lane.b32.xlu0 %v1194, 3
        %v1208 = vpop.permute.xlu0 %1207
        %1209 = vrot.lane.b32.xlu0 %v1198, 3
        %v1210 = vpop.permute.xlu0 %1209
        %v1211 = vsel %vm253, %v1204, %v1208
        %v1212 = vsel %vm253, %v1206, %v1210
        %v1213 = vsel %vm253, %v1208, %v1204
        %v1214 = vsel %vm253, %v1210, %v1206
        %s1215 = sld [smem:[#allocation7 + $0x23]]
        %s1216 = sld [smem:[#allocation7 + $0x54]]
        %v1217 = vstv %s1215
        %v1218 = vmul.f32 %v1213, %v1217
        %v1219 = vmul.f32 %v1214, %v1217
        %v1220 = vadd.f32 %v1182, %v1218
        %v1221 = vadd.f32 %v1183, %v1219
        %v1222 = vstv %s1216
        %v1223 = vmul.f32 %v1211, %v1222
        %v1224 = vmul.f32 %v1212, %v1222
        %v1225 = vadd.f32 %v1220, %v1223
        %v1226 = vadd.f32 %v1221, %v1224
        %1227 = vrot.lane.b32.xlu0 %v1191, 2
        %v1228 = vpop.permute.xlu0 %1227
        %1229 = vrot.lane.b32.xlu0 %v1196, 2
        %v1230 = vpop.permute.xlu0 %1229
        %1231 = vrot.lane.b32.xlu0 %v1194, 2
        %v1232 = vpop.permute.xlu0 %1231
        %1233 = vrot.lane.b32.xlu0 %v1198, 2
        %v1234 = vpop.permute.xlu0 %1233
        %v1235 = vsel %vm278, %v1228, %v1232
        %v1236 = vsel %vm278, %v1230, %v1234
        %v1237 = vsel %vm278, %v1232, %v1228
        %v1238 = vsel %vm278, %v1234, %v1230
        %s1239 = sld [smem:[#allocation7 + $0x24]]
        %s1240 = sld [smem:[#allocation7 + $0x55]]
        %v1241 = vstv %s1239
        %v1242 = vmul.f32 %v1237, %v1241
        %v1243 = vmul.f32 %v1238, %v1241
        %v1244 = vadd.f32 %v1225, %v1242
        %v1245 = vadd.f32 %v1226, %v1243
        %v1246 = vstv %s1240
        %v1247 = vmul.f32 %v1235, %v1246
        %v1248 = vmul.f32 %v1236, %v1246
        %v1249 = vadd.f32 %v1244, %v1247
        %v1250 = vadd.f32 %v1245, %v1248
        %1251 = vrot.lane.b32.xlu0 %v1191, 1
        %v1252 = vpop.permute.xlu0 %1251
        %1253 = vrot.lane.b32.xlu0 %v1196, 1
        %v1254 = vpop.permute.xlu0 %1253
        %1255 = vrot.lane.b32.xlu0 %v1194, 1
        %v1256 = vpop.permute.xlu0 %1255
        %1257 = vrot.lane.b32.xlu0 %v1198, 1
        %v1258 = vpop.permute.xlu0 %1257
        %v1259 = vsel %vm303, %v1252, %v1256
        %v1260 = vsel %vm303, %v1254, %v1258
        %v1261 = vsel %vm303, %v1256, %v1252
        %v1262 = vsel %vm303, %v1258, %v1254
        %s1263 = sld [smem:[#allocation7 + $0x25]]
        %s1264 = sld [smem:[#allocation7 + $0x56]]
        %v1265 = vstv %s1263
        %v1266 = vmul.f32 %v1261, %v1265
        %v1267 = vmul.f32 %v1262, %v1265
        %v1268 = vadd.f32 %v1249, %v1266
        %v1269 = vadd.f32 %v1250, %v1267
        %v1270 = vstv %s1264
        %v1271 = vmul.f32 %v1259, %v1270
        %v1272 = vmul.f32 %v1260, %v1270
        %v1273 = vadd.f32 %v1268, %v1271
        %v1274 = vadd.f32 %v1269, %v1272
        %s1275 = sld [smem:[#allocation7 + $0x26]]
        %s1276 = sld [smem:[#allocation7 + $0x57]]
        %v1277 = vstv %s1275
        %v1278 = vmul.f32 %v1184, %v1277
        %v1279 = vmul.f32 %v981, %v1277
        %v1280 = vmul.f32 %v983, %v1277
        %v1284 = vrot.slane %v1278, 2
        %v1285 = vrot.slane %v1279, 2
        %v1286 = vsel %vm1188, %v1284, %v1285
        %v1287 = vrot.slane %v1280, 2
        %v1288 = vsel %vm1188, %v1285, %v1287
        %v1291 = vadd.f32 %v1273, %v1286
        %v1292 = vadd.f32 %v1274, %v1288
        %v1293 = vstv %s1276
        %v1294 = vmul.f32 %v1185, %v1293
        %v1295 = vmul.f32 %v982, %v1293
        %v1296 = vmul.f32 %v984, %v1293
        %v1300 = vrot.slane %v1294, 2
        %v1301 = vrot.slane %v1295, 2
        %v1302 = vsel %vm1188, %v1300, %v1301
        %v1303 = vrot.slane %v1296, 2
        %v1304 = vsel %vm1188, %v1301, %v1303
        %v1307 = vadd.f32 %v1291, %v1302
        %v1308 = vadd.f32 %v1292, %v1304
        %1309 = vrot.lane.b32.xlu0 %v1191, 127
        %v1310 = vpop.permute.xlu0 %1309
        %1311 = vrot.lane.b32.xlu0 %v1196, 127
        %v1312 = vpop.permute.xlu0 %1311
        %1313 = vrot.lane.b32.xlu0 %v1194, 127
        %v1314 = vpop.permute.xlu0 %1313
        %1315 = vrot.lane.b32.xlu0 %v1198, 127
        %v1316 = vpop.permute.xlu0 %1315
        %v1317 = vsel %vm362, %v1310, %v1314
        %v1318 = vsel %vm362, %v1312, %v1316
        %v1319 = vsel %vm362, %v1314, %v1310
        %v1320 = vsel %vm362, %v1316, %v1312
        %s1321 = sld [smem:[#allocation7 + $0x27]]
        %s1322 = sld [smem:[#allocation7 + $0x58]]
        %v1323 = vstv %s1321
        %v1324 = vmul.f32 %v1317, %v1323
        %v1325 = vmul.f32 %v1318, %v1323
        %v1326 = vadd.f32 %v1307, %v1324
        %v1327 = vadd.f32 %v1308, %v1325
        %v1328 = vstv %s1322
        %v1329 = vmul.f32 %v1319, %v1328
        %v1330 = vmul.f32 %v1320, %v1328
        %v1331 = vadd.f32 %v1326, %v1329
        %v1332 = vadd.f32 %v1327, %v1330
        %1333 = vrot.lane.b32.xlu0 %v1191, 126
        %v1334 = vpop.permute.xlu0 %1333
        %1335 = vrot.lane.b32.xlu0 %v1196, 126
        %v1336 = vpop.permute.xlu0 %1335
        %1337 = vrot.lane.b32.xlu0 %v1194, 126
        %v1338 = vpop.permute.xlu0 %1337
        %1339 = vrot.lane.b32.xlu0 %v1198, 126
        %v1340 = vpop.permute.xlu0 %1339
        %v1341 = vsel %vm387, %v1334, %v1338
        %v1342 = vsel %vm387, %v1336, %v1340
        %v1343 = vsel %vm387, %v1338, %v1334
        %v1344 = vsel %vm387, %v1340, %v1336
        %s1345 = sld [smem:[#allocation7 + $0x28]]
        %s1346 = sld [smem:[#allocation7 + $0x59]]
        %v1347 = vstv %s1345
        %v1348 = vmul.f32 %v1341, %v1347
        %v1349 = vmul.f32 %v1342, %v1347
        %v1350 = vadd.f32 %v1331, %v1348
        %v1351 = vadd.f32 %v1332, %v1349
        %v1352 = vstv %s1346
        %v1353 = vmul.f32 %v1343, %v1352
        %v1354 = vmul.f32 %v1344, %v1352
        %v1355 = vadd.f32 %v1350, %v1353
        %v1356 = vadd.f32 %v1351, %v1354
        %1357 = vrot.lane.b32.xlu0 %v1191, 125
        %v1358 = vpop.permute.xlu0 %1357
        %1359 = vrot.lane.b32.xlu0 %v1196, 125
        %v1360 = vpop.permute.xlu0 %1359
        %1361 = vrot.lane.b32.xlu0 %v1194, 125
        %v1362 = vpop.permute.xlu0 %1361
        %1363 = vrot.lane.b32.xlu0 %v1198, 125
        %v1364 = vpop.permute.xlu0 %1363
        %v1365 = vsel %vm412, %v1358, %v1362
        %v1366 = vsel %vm412, %v1360, %v1364
        %v1367 = vsel %vm412, %v1362, %v1358
        %v1368 = vsel %vm412, %v1364, %v1360
        %s1369 = sld [smem:[#allocation7 + $0x29]]
        %s1370 = sld [smem:[#allocation7 + $0x5a]]
        %v1371 = vstv %s1369
        %v1372 = vmul.f32 %v1365, %v1371
        %v1373 = vmul.f32 %v1366, %v1371
        %v1374 = vadd.f32 %v1355, %v1372
        %v1375 = vadd.f32 %v1356, %v1373
        %v1376 = vstv %s1370
        %v1377 = vmul.f32 %v1367, %v1376
        %v1378 = vmul.f32 %v1368, %v1376
        %v1379 = vadd.f32 %v1374, %v1377
        %v1380 = vadd.f32 %v1375, %v1378
        %v1381 = vld [vmem:[#allocation2 + $0x10] sm:$0xf8]
        %v1382 = vld [vmem:[#allocation2 + $0x18] sm:$0xf8]
        %vm1385 = vcmask 1044480
        %v1386 = vrot.slane %v1381, 3
        %v1387 = vrot.slane %v981, 3
        %v1388 = vsel %vm1385, %v1386, %v1387
        %v1389 = vrot.slane %v1382, 3
        %v1390 = vrot.slane %v982, 3
        %v1391 = vsel %vm1385, %v1389, %v1390
        %v1392 = vrot.slane %v983, 3
        %v1393 = vsel %vm1385, %v1387, %v1392
        %v1394 = vrot.slane %v984, 3
        %v1395 = vsel %vm1385, %v1390, %v1394
        %1400 = vrot.lane.b32.xlu0 %v1388, 3
        %v1401 = vpop.permute.xlu0 %1400
        %1402 = vrot.lane.b32.xlu0 %v1393, 3
        %v1403 = vpop.permute.xlu0 %1402
        %1404 = vrot.lane.b32.xlu0 %v1391, 3
        %v1405 = vpop.permute.xlu0 %1404
        %1406 = vrot.lane.b32.xlu0 %v1395, 3
        %v1407 = vpop.permute.xlu0 %1406
        %v1408 = vsel %vm253, %v1401, %v1405
        %v1409 = vsel %vm253, %v1403, %v1407
        %v1410 = vsel %vm253, %v1405, %v1401
        %v1411 = vsel %vm253, %v1407, %v1403
        %s1412 = sld [smem:[#allocation7 + $0x2a]]
        %s1413 = sld [smem:[#allocation7 + $0x5b]]
        %v1414 = vstv %s1412
        %v1415 = vmul.f32 %v1410, %v1414
        %v1416 = vmul.f32 %v1411, %v1414
        %v1417 = vadd.f32 %v1379, %v1415
        %v1418 = vadd.f32 %v1380, %v1416
        %v1419 = vstv %s1413
        %v1420 = vmul.f32 %v1408, %v1419
        %v1421 = vmul.f32 %v1409, %v1419
        %v1422 = vadd.f32 %v1417, %v1420
        %v1423 = vadd.f32 %v1418, %v1421
        %1424 = vrot.lane.b32.xlu0 %v1388, 2
        %v1425 = vpop.permute.xlu0 %1424
        %1426 = vrot.lane.b32.xlu0 %v1393, 2
        %v1427 = vpop.permute.xlu0 %1426
        %1428 = vrot.lane.b32.xlu0 %v1391, 2
        %v1429 = vpop.permute.xlu0 %1428
        %1430 = vrot.lane.b32.xlu0 %v1395, 2
        %v1431 = vpop.permute.xlu0 %1430
        %v1432 = vsel %vm278, %v1425, %v1429
        %v1433 = vsel %vm278, %v1427, %v1431
        %v1434 = vsel %vm278, %v1429, %v1425
        %v1435 = vsel %vm278, %v1431, %v1427
        %s1436 = sld [smem:[#allocation7 + $0x2b]]
        %s1437 = sld [smem:[#allocation7 + $0x5c]]
        %v1438 = vstv %s1436
        %v1439 = vmul.f32 %v1434, %v1438
        %v1440 = vmul.f32 %v1435, %v1438
        %v1441 = vadd.f32 %v1422, %v1439
        %v1442 = vadd.f32 %v1423, %v1440
        %v1443 = vstv %s1437
        %v1444 = vmul.f32 %v1432, %v1443
        %v1445 = vmul.f32 %v1433, %v1443
        %v1446 = vadd.f32 %v1441, %v1444
        %v1447 = vadd.f32 %v1442, %v1445
        %1448 = vrot.lane.b32.xlu0 %v1388, 1
        %v1449 = vpop.permute.xlu0 %1448
        %1450 = vrot.lane.b32.xlu0 %v1393, 1
        %v1451 = vpop.permute.xlu0 %1450
        %1452 = vrot.lane.b32.xlu0 %v1391, 1
        %v1453 = vpop.permute.xlu0 %1452
        %1454 = vrot.lane.b32.xlu0 %v1395, 1
        %v1455 = vpop.permute.xlu0 %1454
        %v1456 = vsel %vm303, %v1449, %v1453
        %v1457 = vsel %vm303, %v1451, %v1455
        %v1458 = vsel %vm303, %v1453, %v1449
        %v1459 = vsel %vm303, %v1455, %v1451
        %s1460 = sld [smem:[#allocation7 + $0x2c]]
        %s1461 = sld [smem:[#allocation7 + $0x5d]]
        %v1462 = vstv %s1460
        %v1463 = vmul.f32 %v1458, %v1462
        %v1464 = vmul.f32 %v1459, %v1462
        %v1465 = vadd.f32 %v1446, %v1463
        %v1466 = vadd.f32 %v1447, %v1464
        %v1467 = vstv %s1461
        %v1468 = vmul.f32 %v1456, %v1467
        %v1469 = vmul.f32 %v1457, %v1467
        %v1470 = vadd.f32 %v1465, %v1468
        %v1471 = vadd.f32 %v1466, %v1469
        %s1472 = sld [smem:[#allocation7 + $0x2d]]
        %s1473 = sld [smem:[#allocation7 + $0x5e]]
        %v1474 = vstv %s1472
        %v1475 = vmul.f32 %v1381, %v1474
        %v1476 = vmul.f32 %v981, %v1474
        %v1477 = vmul.f32 %v983, %v1474
        %v1481 = vrot.slane %v1475, 3
        %v1482 = vrot.slane %v1476, 3
        %v1483 = vsel %vm1385, %v1481, %v1482
        %v1484 = vrot.slane %v1477, 3
        %v1485 = vsel %vm1385, %v1482, %v1484
        %v1488 = vadd.f32 %v1470, %v1483
        %v1489 = vadd.f32 %v1471, %v1485
        %v1490 = vstv %s1473
        %v1491 = vmul.f32 %v1382, %v1490
        %v1492 = vmul.f32 %v982, %v1490
        %v1493 = vmul.f32 %v984, %v1490
        %v1497 = vrot.slane %v1491, 3
        %v1498 = vrot.slane %v1492, 3
        %v1499 = vsel %vm1385, %v1497, %v1498
        %v1500 = vrot.slane %v1493, 3
        %v1501 = vsel %vm1385, %v1498, %v1500
        %v1504 = vadd.f32 %v1488, %v1499
        %v1505 = vadd.f32 %v1489, %v1501
        %1506 = vrot.lane.b32.xlu0 %v1388, 127
        %v1507 = vpop.permute.xlu0 %1506
        %1508 = vrot.lane.b32.xlu0 %v1393, 127
        %v1509 = vpop.permute.xlu0 %1508
        %1510 = vrot.lane.b32.xlu0 %v1391, 127
        %v1511 = vpop.permute.xlu0 %1510
        %1512 = vrot.lane.b32.xlu0 %v1395, 127
        %v1513 = vpop.permute.xlu0 %1512
        %v1514 = vsel %vm362, %v1507, %v1511
        %v1515 = vsel %vm362, %v1509, %v1513
        %v1516 = vsel %vm362, %v1511, %v1507
        %v1517 = vsel %vm362, %v1513, %v1509
        %s1518 = sld [smem:[#allocation7 + $0x2e]]
        %s1519 = sld [smem:[#allocation7 + $0x5f]]
        %v1520 = vstv %s1518
        %v1521 = vmul.f32 %v1514, %v1520
        %v1522 = vmul.f32 %v1515, %v1520
        %v1523 = vadd.f32 %v1504, %v1521
        %v1524 = vadd.f32 %v1505, %v1522
        %v1525 = vstv %s1519
        %v1526 = vmul.f32 %v1516, %v1525
        %v1527 = vmul.f32 %v1517, %v1525
        %v1528 = vadd.f32 %v1523, %v1526
        %v1529 = vadd.f32 %v1524, %v1527
        %1530 = vrot.lane.b32.xlu0 %v1388, 126
        %v1531 = vpop.permute.xlu0 %1530
        %1532 = vrot.lane.b32.xlu0 %v1393, 126
        %v1533 = vpop.permute.xlu0 %1532
        %1534 = vrot.lane.b32.xlu0 %v1391, 126
        %v1535 = vpop.permute.xlu0 %1534
        %1536 = vrot.lane.b32.xlu0 %v1395, 126
        %v1537 = vpop.permute.xlu0 %1536
        %v1538 = vsel %vm387, %v1531, %v1535
        %v1539 = vsel %vm387, %v1533, %v1537
        %v1540 = vsel %vm387, %v1535, %v1531
        %v1541 = vsel %vm387, %v1537, %v1533
        %s1542 = sld [smem:[#allocation7 + $0x2f]]
        %s1543 = sld [smem:[#allocation7 + $0x60]]
        %v1544 = vstv %s1542
        %v1545 = vmul.f32 %v1538, %v1544
        %v1546 = vmul.f32 %v1539, %v1544
        %v1547 = vadd.f32 %v1528, %v1545
        %v1548 = vadd.f32 %v1529, %v1546
        %v1549 = vstv %s1543
        %v1550 = vmul.f32 %v1540, %v1549
        %v1551 = vmul.f32 %v1541, %v1549
        %v1552 = vadd.f32 %v1547, %v1550
        %v1553 = vadd.f32 %v1548, %v1551
        %1554 = vrot.lane.b32.xlu0 %v1388, 125
        %v1555 = vpop.permute.xlu0 %1554
        %1556 = vrot.lane.b32.xlu0 %v1393, 125
        %v1557 = vpop.permute.xlu0 %1556
        %1558 = vrot.lane.b32.xlu0 %v1391, 125
        %v1559 = vpop.permute.xlu0 %1558
        %1560 = vrot.lane.b32.xlu0 %v1395, 125
        %v1561 = vpop.permute.xlu0 %1560
        %v1562 = vsel %vm412, %v1555, %v1559
        %v1563 = vsel %vm412, %v1557, %v1561
        %v1564 = vsel %vm412, %v1559, %v1555
        %v1565 = vsel %vm412, %v1561, %v1557
        %s1566 = sld [smem:[#allocation7 + $0x30]]
        %s1567 = sld [smem:[#allocation7 + $0x61]]
        %v1568 = vstv %s1566
        %v1569 = vmul.f32 %v1562, %v1568
        %v1570 = vmul.f32 %v1563, %v1568
        %v1571 = vadd.f32 %v1552, %v1569
        %v1572 = vadd.f32 %v1553, %v1570
        %v1573 = vstv %s1567
        %v1574 = vmul.f32 %v1564, %v1573
        %v1575 = vmul.f32 %v1565, %v1573
        %v1576 = vadd.f32 %v1571, %v1574
        %v1577 = vadd.f32 %v1572, %v1575
        %v1578 = vxor.u32 %v1576, 2147483648
        %v1579 = vxor.u32 %v1577, 2147483648
        %v1580 = vmul.f32 %v1578, 1.442695
        %v1581 = vpow.pop %v1580
        %v1582 = vmul.f32 %v1579, 1.442695
        %v1583 = vpow.pop %v1582
        %v1584 = vadd.f32 %v1581, 1.0
        %v1585 = vadd.f32 %v1583, 1.0
        %v1586 = vrcp.pop %v1584
        %v1587 = vmul.f32 1.0, %v1586
        %v1588 = vrcp.pop %v1585
        %v1589 = vmul.f32 1.0, %v1588
        %v1590 = vld [vmem:[%s150] sm:$0xff]
        %v1591 = vld [vmem:[%s150 + $0x8] sm:$0xff]
        %v1592 = vld [vmem:[%s150 + $0x10] sm:$0xff]
        %v1593 = vld [vmem:[%s150 + $0x18] sm:$0xff]
        %v1594 = vld [vmem:[%s150 + $0x20] sm:$0xff]
        %v1595 = vld [vmem:[%s150 + $0x28] sm:$0xff]
        %v1596 = vld [vmem:[%s150 + $0x30] sm:$0xff]
        %v1597 = vld [vmem:[%s150 + $0x38] sm:$0xff]
        %v1598 = vmul.f32 %v1590, %v1587
        %v1599 = vmul.f32 %v1591, %v1589
        %v1600 = vmul.f32 %v1592, %v1587
        %v1601 = vmul.f32 %v1593, %v1589
        %v1602 = vmul.f32 %v1594, %v1587
        %v1603 = vmul.f32 %v1595, %v1589
        %v1604 = vmul.f32 %v1596, %v1587
        %v1605 = vmul.f32 %v1597, %v1589
        %1606 = vst.msk [vmem:[%s175] sm:$0xff] %vm211, %v1598
        %1607 = vst.msk [vmem:[%s175 + $0x8] sm:$0xff] %vm211, %v1599
        %1608 = vst.msk [vmem:[%s175 + $0x10] sm:$0xff] %vm211, %v1600
        %1609 = vst.msk [vmem:[%s175 + $0x18] sm:$0xff] %vm211, %v1601
        %1610 = vst.msk [vmem:[%s175 + $0x20] sm:$0xff] %vm211, %v1602
        %1611 = vst.msk [vmem:[%s175 + $0x28] sm:$0xff] %vm211, %v1603
        %1612 = vst.msk [vmem:[%s175 + $0x30] sm:$0xff] %vm211, %v1604
        %1613 = vst.msk [vmem:[%s175 + $0x38] sm:$0xff] %vm211, %v1605
        %s1614 = sand.u32 %s75, 1
        %s1615 = scalar_lea.sflag [#allocation5], %s1614
        %s1616 = sand.u32 %s75, 1
        %s1617 = smul.addr %s1616, 64
        %s1618 = scalar_lea.vmem [#allocation8], %s1617
        // Predicated region
        $region37: #{tpu_custom_call.1} parent=27 // pred_check
          %p1619 = pneg %p85
        $region38: #{tpu_custom_call.1} parent=27 // pred_check_branch
          %1621 = sbr.rel (%p1619) target = $region40
        $region39: #{tpu_custom_call.1} parent=27 // pred_region
          %s1623 = ssub.s32 1024, 1024
          %1624 = vsyncadd %s1615, %s1623
          %s1625 = smul.addr %s20, 8
          %s1626 = smul.addr %s1625, 128
          %s1627 = scalar_lea.hbm %s2, %s1626
          %s1628 = sshll.u32 %s1618, 4
          %s1629 = int_to_ptr.vmem [resolvable:$true] %s1628
          %1634 = dma.vmem_to_hbm [thread:$0]  %s1629, 1024, %s1627, %s1615, 128, 128, 8
        $region40: #{tpu_custom_call.1} parent=27 // pred_fallthru
          _
      $region28: #{tpu_custom_call.1} parent=5 // pred_fallthru
        _
      %p1635 = scmp.le.s32.totalorder 2, %s15
      // Predicated region
      $region41: #{tpu_custom_call.1} parent=5 // pred_check
        %p1636 = pneg %p1635
      $region42: #{tpu_custom_call.1} parent=5 // pred_check_branch
        %1638 = sbr.rel (%p1636) target = $region44
      $region43: #{tpu_custom_call.1} parent=5 // pred_region
        %s1639 = ssub.s32 %s15, 2
        // Predicated region
        $region45: #{tpu_custom_call.1} parent=43 // pred_check
          %p1640 = pneg %p91
        $region46: #{tpu_custom_call.1} parent=43 // pred_check_branch
          %1642 = sbr.rel (%p1640) target = $region48
        $region47: #{tpu_custom_call.1} parent=43 // pred_region
          %s1643 = sand.u32 %s76, 1
          %s1644 = scalar_lea.sflag [#allocation5], %s1643
          %s1645 = sand.u32 %s76, 1
          %s1646 = smul.addr %s1645, 64
          %s1647 = scalar_lea.vmem [#allocation8], %s1646
          %1648 = dma.done %s1644, 1024
        $region48: #{tpu_custom_call.1} parent=43 // pred_fallthru
          _
      $region44: #{tpu_custom_call.1} parent=5 // pred_fallthru
        _
    $region6: #{tpu_custom_call.1} parent=1 // loop_footer
      %s19 = sadd.s32 1, %s15
    $region7: #{tpu_custom_call.1} parent=1 // loop_footer_branch
      %14 = sbr.rel target = $region3
    $region8: #{tpu_custom_call.1} parent=1 // loop_exit
      _
    %1649 = vsyncpa [#allocation4], 1
    %s1650 = scalar_lea.sflag [#allocation4], 1
    %1651 = vsyncpa %s1650, 1
    %1652 = vsyncpa [#allocation5], 1
    %s1653 = scalar_lea.sflag [#allocation5], 1
    %1654 = vsyncpa %s1653, 1
    %1655 = vsyncpa [#allocation6], 1
    %s1656 = scalar_lea.sflag [#allocation6], 1
    %1657 = vsyncpa %s1656, 1

</llo_original>
